<compile_context>
chip_gen: v5e
topology: v5e:2x2
jax: 0.10.0
libtpu: 0.0.40
codegen_flags: <defaults>
</compile_context>

<pallas_src>
import math

import jax
import jax.numpy as jnp
import numpy as np
from jax.experimental import pallas as pl
from jax.experimental.pallas import tpu as pltpu

# ---------------- hyper-parameters (consistent with BiTDecoder.__init__) -----
NEURAL_DIM = 16        # neural_dim
N_CLASSES = 8          # n_classes  (fc outputs n_classes + 1)
HIDDEN_DIM = 32        # hidden_dim
LAYER_DIM = 2          # layer_dim (stacked GRU layers)
N_DAYS = 4             # nDays
SMOOTH_K = 20          # GaussianSmoothing kernel size (hard-coded 20)
SMOOTH_SIGMA = 2.0     # gaussianSmoothWidth
KERNEL_LEN = 14        # assumed self.kernelLen
STRIDE_LEN = 4         # assumed self.strideLen

BATCH = 2
SEQ_T = 32             # time steps of the neural input

PAD_L = (SMOOTH_K - 1) // 2                      # 9
PAD_R = SMOOTH_K - 1 - PAD_L                     # 10
T_PAD = SEQ_T + SMOOTH_K - 1                     # 51
T_PAD_AL = ((T_PAD + 7) // 8) * 8                # 56 (sublane-aligned padded length)
L_OUT = (SEQ_T - KERNEL_LEN) // STRIDE_LEN + 1   # 5
N_OUT = N_CLASSES + 1                            # 9
H3 = 3 * HIDDEN_DIM                              # 96 (gate-stacked [r|z|n])
OUT_LANES = 128                                  # lane-dense output width

# ---------------- packed weight-slab layout (rows of a (SLAB_ROWS, 128) f32) -
OFF_W0 = 0                                       # (K*D, 3H) layer-0 W_ih, row = k*D+d
OFF_BIH0 = KERNEL_LEN * NEURAL_DIM               # 224
_base = OFF_BIH0 + 8
OFF_WIH, OFF_BIH = {}, {}
for _j in range(1, LAYER_DIM):
    OFF_WIH[_j] = _base
    OFF_BIH[_j] = _base + HIDDEN_DIM
    _base += HIDDEN_DIM + 8
OFF_WHH, OFF_BHH = {}, {}
for _j in range(LAYER_DIM):
    OFF_WHH[_j] = _base
    OFF_BHH[_j] = _base + HIDDEN_DIM
    _base += HIDDEN_DIM + 8
OFF_FCW = _base
OFF_FCB = OFF_FCW + HIDDEN_DIM
SLAB_ROWS = OFF_FCB + 8                          # 392 (multiple of 8)


def _make_gaussian_kernel(k, sigma):
    """Same construction as GaussianSmoothing: normalized gaussian, size k."""
    x = np.arange(k, dtype=np.float64)
    mean = (k - 1) / 2.0
    w = np.exp(-(((x - mean) / sigma) ** 2) / 2.0) / (sigma * math.sqrt(2.0 * math.pi))
    w = w / w.sum()
    return w.astype(np.float32)


# -----------------------------------------------------------------------------
# The single fused kernel (one grid step; all of B is processed here).
# -----------------------------------------------------------------------------
def bit_decoder_kernel(gbd_ref, xpad_ref, dw_ref, db_ref, slab_ref, out_ref,
                       y_scr, u_scr, gi_scr, seq_scr):
    f32 = jnp.float32
    H, D, K, S = HIDDEN_DIM, NEURAL_DIM, KERNEL_LEN, STRIDE_LEN
    B, T, L = BATCH, SEQ_T, L_OUT

    # 1) Gaussian smoothing for the whole batch: ONE block-diag Toeplitz matmul.
    sm_all = jnp.dot(gbd_ref[...], xpad_ref[...],
                     preferred_element_type=f32)                    # (B*T, D)

    # 2) Per-day linear transform (weights pre-gathered in the wrapper) + Softsign.
    for b in range(B):
        sm_b = sm_all[b * T:(b + 1) * T, :]                          # (T, D)
        y_b = jnp.dot(sm_b, dw_ref[b], preferred_element_type=f32) + db_ref[b]
        y_b = y_b / (1.0 + jnp.abs(y_b))                             # Softsign
        y_scr[pl.ds(b * T, T), :] = y_b

    # 3) Unfold: build U (B*L, K*D) once (rows = b*L + l, cols = k*D + d) with
    #    strided sublane reads and lane-offset stores; then ONE big MXU dot.
    for b in range(B):
        for k in range(K):
            blk = y_scr[pl.ds(b * T + k, L, stride=S), :]            # rows l*S+k -> (L, D)
            u_scr[pl.ds(b * L, L), pl.ds(k * D, D)] = blk

    w0 = slab_ref[pl.ds(OFF_W0, K * D), pl.ds(0, H3)]                # (K*D, 3H)
    b0 = slab_ref[pl.ds(OFF_BIH0, 1), pl.ds(0, H3)]                  # (1, 3H)
    gi_scr[...] = jnp.dot(u_scr[...], w0, preferred_element_type=f32) + b0

    def gru_cell(gi, gh, h):
        r = jax.nn.sigmoid(gi[:, :H] + gh[:, :H])
        z = jax.nn.sigmoid(gi[:, H:2 * H] + gh[:, H:2 * H])
        n = jnp.tanh(gi[:, 2 * H:] + r * gh[:, 2 * H:])
        return (1.0 - z) * n + z * h

    # 4) GRU layers. Batch is folded into the M dim of every matmul; the hidden
    #    state lives in registers.  W_hh is loaded once per layer and reused
    #    across the (unrolled) timestep loop.
    #    (Explicit pltpu.matmul_push_rhs staging intentionally not used.)
    for j in range(LAYER_DIM):
        whh = slab_ref[pl.ds(OFF_WHH[j], H), pl.ds(0, H3)]           # (H, 3H)
        bhh = slab_ref[pl.ds(OFF_BHH[j], 1), pl.ds(0, H3)]           # (1, 3H)
        if j > 0:
            wih = slab_ref[pl.ds(OFF_WIH[j], H), pl.ds(0, H3)]
            bih = slab_ref[pl.ds(OFF_BIH[j], 1), pl.ds(0, H3)]
            x_seq = seq_scr[...]                                     # (L*B, H), rows l*B+b
            gi_scr[...] = jnp.dot(x_seq, wih, preferred_element_type=f32) + bih

        h = jnp.zeros((B, H), f32)
        for l in range(L):
            if j == 0:
                gi_l = gi_scr[pl.ds(l, B, stride=L), :]              # rows {b*L + l}
            else:
                gi_l = gi_scr[pl.ds(l * B, B), :]                    # rows {l*B + b}
            gh = jnp.dot(h, whh, preferred_element_type=f32) + bhh
            h = gru_cell(gi_l, gh, h)
            seq_scr[pl.ds(l * B, B), :] = h                          # (B, H) block store

    # 5) fc_decoder_out fused into the epilogue; lane-dense (128-wide) store.
    fcw = slab_ref[pl.ds(OFF_FCW, H), :]                             # (H, 128), cols>=N_OUT are 0
    fcb = slab_ref[pl.ds(OFF_FCB, 1), :]                             # (1, 128)
    out_ref[...] = jnp.dot(seq_scr[...], fcw, preferred_element_type=f32) + fcb


def bit_decoder_forward(neural_input, day_idx, params):
    """neural_input: (B, T, D) f32, day_idx: (B,) int32 -> (B, L, n_classes+1)."""
    B, T, D = neural_input.shape
    assert (B, T, D) == (BATCH, SEQ_T, NEURAL_DIM)

    # 'same' conv padding (left=9, right=10) + alignment padding, batch flattened.
    xpad = jnp.pad(neural_input,
                   ((0, 0), (PAD_L, PAD_R + (T_PAD_AL - T_PAD)), (0, 0)))
    xpad_flat = xpad.reshape(B * T_PAD_AL, D)

    # Block-diagonal Gaussian Toeplitz matrix (trace-time constant).
    gw = _make_gaussian_kernel(SMOOTH_K, SMOOTH_SIGMA)
    gbd = np.zeros((B * T, B * T_PAD_AL), np.float32)
    for b in range(B):
        for k in range(SMOOTH_K):
            gbd[b * T + np.arange(T), b * T_PAD_AL + np.arange(T) + k] = gw[k]
    gbd = jnp.asarray(gbd)

    # Per-day weights gathered outside the kernel (tiny XLA gather).
    dw_g = params["day_w"][day_idx]                  # (B, D, D)
    db_g = params["day_b"][day_idx]                  # (B, 1, D)

    out = pl.pallas_call(
        bit_decoder_kernel,
        out_shape=jax.ShapeDtypeStruct((L_OUT * B, OUT_LANES), jnp.float32),
        grid=(1,),
        in_specs=[
            pl.BlockSpec((B * SEQ_T, B * T_PAD_AL), lambda i: (0, 0)),   # block-diag Toeplitz
            pl.BlockSpec((B * T_PAD_AL, D), lambda i: (0, 0)),           # padded input
            pl.BlockSpec((B, D, D), lambda i: (0, 0, 0)),                # dayWeights[dayIdx]
            pl.BlockSpec((B, 1, D), lambda i: (0, 0, 0)),                # dayBias[dayIdx]
            pl.BlockSpec((SLAB_ROWS, 128), lambda i: (0, 0)),            # packed weight slab
        ],
        out_specs=pl.BlockSpec((L_OUT * B, OUT_LANES), lambda i: (0, 0)),
        scratch_shapes=[
            pltpu.VMEM((B * SEQ_T, D), jnp.float32),                     # y (post-softsign)
            pltpu.VMEM((B * L_OUT, KERNEL_LEN * D), jnp.float32),        # unfolded U
            pltpu.VMEM((B * L_OUT, H3), jnp.float32),                    # gate pre-activations
            pltpu.VMEM((B * L_OUT, HIDDEN_DIM), jnp.float32),            # layer output sequence
        ],
        compiler_params=pltpu.CompilerParams(dimension_semantics=("arbitrary",)),
    )(gbd, xpad_flat, dw_g, db_g, params["slab"])

    # kernel rows are l-major (l*B + b); slice back to (B, L, n_classes+1).
    return out.reshape(L_OUT, B, OUT_LANES).transpose(1, 0, 2)[:, :, :N_OUT]


# -----------------------------------------------------------------------------
# Parameter construction (PyTorch layout first, then packed for the kernel).
# -----------------------------------------------------------------------------
def init_params(key):
    H, D, K = HIDDEN_DIM, NEURAL_DIM, KERNEL_LEN
    bound = 1.0 / math.sqrt(H)

    packed = {}
    # dayWeights: overwritten with identity per day in __init__; dayBias zeros.
    packed["day_w"] = jnp.tile(jnp.eye(D, dtype=jnp.float32)[None], (N_DAYS, 1, 1))
    packed["day_b"] = jnp.zeros((N_DAYS, 1, D), jnp.float32)

    # GRU weights in PyTorch layout: W_ih (3H,F), W_hh (3H,H), gate order [r,z,n].
    torch_gru = []
    for layer in range(LAYER_DIM):
        f = D * K if layer == 0 else H
        key, k1, k2, k3, k4 = jax.random.split(key, 5)
        wih = jax.random.uniform(k1, (3 * H, f), jnp.float32, -bound, bound)
        whh = jax.random.uniform(k2, (3 * H, H), jnp.float32, -bound, bound)
        bih = jax.random.uniform(k3, (3 * H,), jnp.float32, -bound, bound)
        bhh = jax.random.uniform(k4, (3 * H,), jnp.float32, -bound, bound)
        torch_gru.append((wih, whh, bih, bhh))

    key, k1, k2 = jax.random.split(key, 3)
    fc_w = jax.random.uniform(k1, (H, N_OUT), jnp.float32, -bound, bound)
    fc_b = jax.random.uniform(k2, (N_OUT,), jnp.float32, -bound, bound)

    # ---- single lane-aligned weight slab used by the fused kernel ----
    slab = np.zeros((SLAB_ROWS, 128), np.float32)
    # layer-0 W_ih^T rows are indexed f = d*K + k (PyTorch Unfold channel order);
    # regroup so row = k*D + d matches the in-kernel U layout.
    wih0 = np.asarray(torch_gru[0][0])                              # (3H, K*D)
    w0_cat = wih0.T.reshape(D, K, 3 * H).transpose(1, 0, 2).reshape(K * D, 3 * H)
    slab[OFF_W0:OFF_W0 + K * D, :3 * H] = w0_cat
    slab[OFF_BIH0, :3 * H] = np.asarray(torch_gru[0][2])
    for j in range(1, LAYER_DIM):
        slab[OFF_WIH[j]:OFF_WIH[j] + H, :3 * H] = np.asarray(torch_gru[j][0]).T
        slab[OFF_BIH[j], :3 * H] = np.asarray(torch_gru[j][2])
    for j in range(LAYER_DIM):
        slab[OFF_WHH[j]:OFF_WHH[j] + H, :3 * H] = np.asarray(torch_gru[j][1]).T
        slab[OFF_BHH[j], :3 * H] = np.asarray(torch_gru[j][3])
    slab[OFF_FCW:OFF_FCW + H, :N_OUT] = np.asarray(fc_w)
    slab[OFF_FCB, :N_OUT] = np.asarray(fc_b)
    packed["slab"] = jnp.asarray(slab)

    ref_params = {"gru": torch_gru, "fc_w": fc_w, "fc_b": fc_b,
                  "day_w": packed["day_w"], "day_b": packed["day_b"]}
    return packed, ref_params


# -----------------------------------------------------------------------------
# Pure-JAX reference (mirrors the PyTorch forward), high-precision matmuls.
# -----------------------------------------------------------------------------
def reference_forward(ref_params, x, day_idx):
    B, T, D = x.shape
    H = HIDDEN_DIM
    HI = jax.lax.Precision.HIGHEST
    gw = _make_gaussian_kernel(SMOOTH_K, SMOOTH_SIGMA)

    xp = jnp.pad(x, ((0, 0), (PAD_L, PAD_R), (0, 0)))
    sm = sum(float(gw[k]) * xp[:, k:k + T, :] for k in range(SMOOTH_K))

    dw = ref_params["day_w"][day_idx]                 # (B, D, D)
    db = ref_params["day_b"][day_idx]                 # (B, 1, D)
    y = jnp.einsum("btd,bdk->btk", sm, dw, precision=HI) + db
    y = y / (1.0 + jnp.abs(y))                        # Softsign

    # torch.nn.Unfold((K,1), stride=S) on (B, D, T, 1), then permute:
    strided = jnp.stack([y[:, l * STRIDE_LEN:l * STRIDE_LEN + KERNEL_LEN, :]
                         for l in range(L_OUT)], axis=1)           # (B, L, K, D)
    strided = strided.transpose(0, 1, 3, 2).reshape(B, L_OUT, D * KERNEL_LEN)

    seq = strided
    for (wih, whh, bih, bhh) in ref_params["gru"]:
        h = jnp.zeros((B, H), jnp.float32)
        outs = []
        for l in range(L_OUT):
            gi = jnp.dot(seq[:, l, :], wih.T, precision=HI) + bih
            gh = jnp.dot(h, whh.T, precision=HI) + bhh
            r = jax.nn.sigmoid(gi[:, :H] + gh[:, :H])
            z = jax.nn.sigmoid(gi[:, H:2 * H] + gh[:, H:2 * H])
            n = jnp.tanh(gi[:, 2 * H:] + r * gh[:, 2 * H:])
            h = (1.0 - z) * n + z * h
            outs.append(h)
        seq = jnp.stack(outs, axis=1)                              # (B, L, H)

    return jnp.dot(seq, ref_params["fc_w"], precision=HI) + ref_params["fc_b"]


if __name__ == "__main__":
    key = jax.random.PRNGKey(0)
    key, k_in, k_day, k_par = jax.random.split(key, 4)

    neural_input = jax.random.normal(k_in, (BATCH, SEQ_T, NEURAL_DIM), jnp.float32)
    day_idx = jax.random.randint(k_day, (BATCH,), 0, N_DAYS, dtype=jnp.int32)
    packed, ref_params = init_params(k_par)

    fwd = jax.jit(bit_decoder_forward)
    out = jax.block_until_ready(fwd(neural_input, day_idx, packed))

    assert out.shape == (BATCH, L_OUT, N_OUT), out.shape
    assert bool(jnp.all(jnp.isfinite(out)))

    ref = reference_forward(ref_params, neural_input, day_idx)
    np.testing.assert_allclose(np.asarray(out), np.asarray(ref), rtol=1e-5, atol=1e-5)

    print("KERNEL_OK")
</pallas_src>

<mosaic_0001>
module attributes {stable_mosaic.version = 11 : i64} {
  func.func @bit_decoder_kernel(%arg0: i32, %arg1: memref<64x112xf32, #tpu.memory_space<vmem>>, %arg2: memref<112x16xf32, #tpu.memory_space<vmem>>, %arg3: memref<2x16x16xf32, #tpu.memory_space<vmem>>, %arg4: memref<2x1x16xf32, #tpu.memory_space<vmem>>, %arg5: memref<392x128xf32, #tpu.memory_space<vmem>>, %arg6: memref<10x128xf32, #tpu.memory_space<vmem>>, %arg7: memref<64x16xf32, #tpu.memory_space<vmem>>, %arg8: memref<10x224xf32, #tpu.memory_space<vmem>>, %arg9: memref<10x96xf32, #tpu.memory_space<vmem>>, %arg10: memref<10x32xf32, #tpu.memory_space<vmem>>) attributes {dimension_semantics = [#tpu.dimension_semantics<arbitrary>], iteration_bounds = array<i64: 1>, scalar_prefetch = 0 : i64, scratch_operands = 4 : i64, tpu.core_type = #tpu.core_type<tc>, window_params = [{pipeline_mode = #tpu.pipeline_mode<synchronous>, transform_indices = @transform_0, window_bounds = array<i64: 64, 112>}, {pipeline_mode = #tpu.pipeline_mode<synchronous>, transform_indices = @transform_1, window_bounds = array<i64: 112, 16>}, {pipeline_mode = #tpu.pipeline_mode<synchronous>, transform_indices = @transform_2, window_bounds = array<i64: 2, 16, 16>}, {pipeline_mode = #tpu.pipeline_mode<synchronous>, transform_indices = @transform_3, window_bounds = array<i64: 2, 1, 16>}, {pipeline_mode = #tpu.pipeline_mode<synchronous>, transform_indices = @transform_4, window_bounds = array<i64: 392, 128>}, {pipeline_mode = #tpu.pipeline_mode<synchronous>, transform_indices = @transform_5, window_bounds = array<i64: 10, 128>}]} {
    %c0 = arith.constant 0 : index
    %c0_0 = arith.constant 0 : index
    %0 = vector.load %arg1[%c0, %c0_0] : memref<64x112xf32, #tpu.memory_space<vmem>>, vector<64x112xf32>
    %c0_1 = arith.constant 0 : index
    %c0_2 = arith.constant 0 : index
    %1 = vector.load %arg2[%c0_1, %c0_2] : memref<112x16xf32, #tpu.memory_space<vmem>>, vector<112x16xf32>
    %cst = arith.constant dense<0.000000e+00> : vector<64x16xf32>
    %2 = tpu.matmul %0, %1, %cst {dimension_numbers = #tpu.dot_dimension_numbers<[1], [0], [0], [1], [0, 0, 1, 1], [], []>} : vector<64x112xf32>, vector<112x16xf32>, vector<64x16xf32> -> vector<64x16xf32>
    %3 = vector.extract_strided_slice %2 {offsets = [0, 0], sizes = [32, 16], strides = [1, 1]} : vector<64x16xf32> to vector<32x16xf32>
    %c0_3 = arith.constant 0 : index
    %c0_4 = arith.constant 0 : index
    %c0_5 = arith.constant 0 : index
    %4 = vector.load %arg3[%c0_3, %c0_4, %c0_5] : memref<2x16x16xf32, #tpu.memory_space<vmem>>, vector<1x16x16xf32>
    %5 = vector.shape_cast %4 : vector<1x16x16xf32> to vector<16x16xf32>
    %cst_6 = arith.constant dense<0.000000e+00> : vector<32x16xf32>
    %6 = tpu.matmul %3, %5, %cst_6 {dimension_numbers = #tpu.dot_dimension_numbers<[1], [0], [0], [1], [0, 0, 1, 1], [], []>} : vector<32x16xf32>, vector<16x16xf32>, vector<32x16xf32> -> vector<32x16xf32>
    %c0_7 = arith.constant 0 : index
    %c0_8 = arith.constant 0 : index
    %c0_9 = arith.constant 0 : index
    %7 = vector.load %arg4[%c0_7, %c0_8, %c0_9] : memref<2x1x16xf32, #tpu.memory_space<vmem>>, vector<1x1x16xf32>
    %8 = vector.shape_cast %7 : vector<1x1x16xf32> to vector<1x16xf32>
    %9 = vector.broadcast %8 : vector<1x16xf32> to vector<32x16xf32>
    %10 = arith.addf %6, %9 : vector<32x16xf32>
    %11 = math.absf %10 : vector<32x16xf32>
    %cst_10 = arith.constant 1.000000e+00 : f32
    %12 = vector.broadcast %cst_10 : f32 to vector<32x16xf32>
    %13 = arith.addf %12, %11 : vector<32x16xf32>
    %14 = arith.divf %10, %13 : vector<32x16xf32>
    %c0_11 = arith.constant 0 : index
    %c0_12 = arith.constant 0 : index
    %15 = vector.load %arg7[%c0_11, %c0_12] : memref<64x16xf32, #tpu.memory_space<vmem>>, vector<32x16xf32>
    tpu.vector_store %arg7[%c0_11, %c0_12], %14 {strides = array<i32>} : memref<64x16xf32, #tpu.memory_space<vmem>>, vector<32x16xf32>,
    %16 = vector.extract_strided_slice %2 {offsets = [32, 0], sizes = [32, 16], strides = [1, 1]} : vector<64x16xf32> to vector<32x16xf32>
    %c1 = arith.constant 1 : index
    %c0_13 = arith.constant 0 : index
    %c0_14 = arith.constant 0 : index
    %17 = vector.load %arg3[%c1, %c0_13, %c0_14] : memref<2x16x16xf32, #tpu.memory_space<vmem>>, vector<1x16x16xf32>
    %18 = vector.shape_cast %17 : vector<1x16x16xf32> to vector<16x16xf32>
    %cst_15 = arith.constant dense<0.000000e+00> : vector<32x16xf32>
    %19 = tpu.matmul %16, %18, %cst_15 {dimension_numbers = #tpu.dot_dimension_numbers<[1], [0], [0], [1], [0, 0, 1, 1], [], []>} : vector<32x16xf32>, vector<16x16xf32>, vector<32x16xf32> -> vector<32x16xf32>
    %c1_16 = arith.constant 1 : index
    %c0_17 = arith.constant 0 : index
    %c0_18 = arith.constant 0 : index
    %20 = vector.load %arg4[%c1_16, %c0_17, %c0_18] : memref<2x1x16xf32, #tpu.memory_space<vmem>>, vector<1x1x16xf32>
    %21 = vector.shape_cast %20 : vector<1x1x16xf32> to vector<1x16xf32>
    %22 = vector.broadcast %21 : vector<1x16xf32> to vector<32x16xf32>
    %23 = arith.addf %19, %22 : vector<32x16xf32>
    %24 = math.absf %23 : vector<32x16xf32>
    %cst_19 = arith.constant 1.000000e+00 : f32
    %25 = vector.broadcast %cst_19 : f32 to vector<32x16xf32>
    %26 = arith.addf %25, %24 : vector<32x16xf32>
    %27 = arith.divf %23, %26 : vector<32x16xf32>
    %c32 = arith.constant 32 : index
    %c0_20 = arith.constant 0 : index
    %28 = vector.load %arg7[%c32, %c0_20] : memref<64x16xf32, #tpu.memory_space<vmem>>, vector<32x16xf32>
    tpu.vector_store %arg7[%c32, %c0_20], %27 {strides = array<i32>} : memref<64x16xf32, #tpu.memory_space<vmem>>, vector<32x16xf32>,
    %c0_21 = arith.constant 0 : index
    %c0_22 = arith.constant 0 : index
    %29 = tpu.strided_load %arg7[%c0_21, %c0_22] {strides = array<i32: 4, 1>} : memref<64x16xf32, #tpu.memory_space<vmem>>, vector<5x16xf32>
    %c0_23 = arith.constant 0 : index
    %c0_24 = arith.constant 0 : index
    %30 = vector.load %arg8[%c0_23, %c0_24] : memref<10x224xf32, #tpu.memory_space<vmem>>, vector<5x16xf32>
    tpu.vector_store %arg8[%c0_23, %c0_24], %29 {strides = array<i32>} : memref<10x224xf32, #tpu.memory_space<vmem>>, vector<5x16xf32>,
    %c1_25 = arith.constant 1 : index
    %c0_26 = arith.constant 0 : index
    %31 = tpu.strided_load %arg7[%c1_25, %c0_26] {strides = array<i32: 4, 1>} : memref<64x16xf32, #tpu.memory_space<vmem>>, vector<5x16xf32>
    %c0_27 = arith.constant 0 : index
    %c16 = arith.constant 16 : index
    %32 = vector.load %arg8[%c0_27, %c16] : memref<10x224xf32, #tpu.memory_space<vmem>>, vector<5x16xf32>
    tpu.vector_store %arg8[%c0_27, %c16], %31 {strides = array<i32>} : memref<10x224xf32, #tpu.memory_space<vmem>>, vector<5x16xf32>,
    %c2 = arith.constant 2 : index
    %c0_28 = arith.constant 0 : index
    %33 = tpu.strided_load %arg7[%c2, %c0_28] {strides = array<i32: 4, 1>} : memref<64x16xf32, #tpu.memory_space<vmem>>, vector<5x16xf32>
    %c0_29 = arith.constant 0 : index
    %c32_30 = arith.constant 32 : index
    %34 = vector.load %arg8[%c0_29, %c32_30] : memref<10x224xf32, #tpu.memory_space<vmem>>, vector<5x16xf32>
    tpu.vector_store %arg8[%c0_29, %c32_30], %33 {strides = array<i32>} : memref<10x224xf32, #tpu.memory_space<vmem>>, vector<5x16xf32>,
    %c3 = arith.constant 3 : index
    %c0_31 = arith.constant 0 : index
    %35 = tpu.strided_load %arg7[%c3, %c0_31] {strides = array<i32: 4, 1>} : memref<64x16xf32, #tpu.memory_space<vmem>>, vector<5x16xf32>
    %c0_32 = arith.constant 0 : index
    %c48 = arith.constant 48 : index
    %36 = vector.load %arg8[%c0_32, %c48] : memref<10x224xf32, #tpu.memory_space<vmem>>, vector<5x16xf32>
    tpu.vector_store %arg8[%c0_32, %c48], %35 {strides = array<i32>} : memref<10x224xf32, #tpu.memory_space<vmem>>, vector<5x16xf32>,
    %c4 = arith.constant 4 : index
    %c0_33 = arith.constant 0 : index
    %37 = tpu.strided_load %arg7[%c4, %c0_33] {strides = array<i32: 4, 1>} : memref<64x16xf32, #tpu.memory_space<vmem>>, vector<5x16xf32>
    %c0_34 = arith.constant 0 : index
    %c64 = arith.constant 64 : index
    %38 = vector.load %arg8[%c0_34, %c64] : memref<10x224xf32, #tpu.memory_space<vmem>>, vector<5x16xf32>
    tpu.vector_store %arg8[%c0_34, %c64], %37 {strides = array<i32>} : memref<10x224xf32, #tpu.memory_space<vmem>>, vector<5x16xf32>,
    %c5 = arith.constant 5 : index
    %c0_35 = arith.constant 0 : index
    %39 = tpu.strided_load %arg7[%c5, %c0_35] {strides = array<i32: 4, 1>} : memref<64x16xf32, #tpu.memory_space<vmem>>, vector<5x16xf32>
    %c0_36 = arith.constant 0 : index
    %c80 = arith.constant 80 : index
    %40 = vector.load %arg8[%c0_36, %c80] : memref<10x224xf32, #tpu.memory_space<vmem>>, vector<5x16xf32>
    tpu.vector_store %arg8[%c0_36, %c80], %39 {strides = array<i32>} : memref<10x224xf32, #tpu.memory_space<vmem>>, vector<5x16xf32>,
    %c6 = arith.constant 6 : index
    %c0_37 = arith.constant 0 : index
    %41 = tpu.strided_load %arg7[%c6, %c0_37] {strides = array<i32: 4, 1>} : memref<64x16xf32, #tpu.memory_space<vmem>>, vector<5x16xf32>
    %c0_38 = arith.constant 0 : index
    %c96 = arith.constant 96 : index
    %42 = vector.load %arg8[%c0_38, %c96] : memref<10x224xf32, #tpu.memory_space<vmem>>, vector<5x16xf32>
    tpu.vector_store %arg8[%c0_38, %c96], %41 {strides = array<i32>} : memref<10x224xf32, #tpu.memory_space<vmem>>, vector<5x16xf32>,
    %c7 = arith.constant 7 : index
    %c0_39 = arith.constant 0 : index
    %43 = tpu.strided_load %arg7[%c7, %c0_39] {strides = array<i32: 4, 1>} : memref<64x16xf32, #tpu.memory_space<vmem>>, vector<5x16xf32>
    %c0_40 = arith.constant 0 : index
    %c112 = arith.constant 112 : index
    %44 = vector.load %arg8[%c0_40, %c112] : memref<10x224xf32, #tpu.memory_space<vmem>>, vector<5x16xf32>
    tpu.vector_store %arg8[%c0_40, %c112], %43 {strides = array<i32>} : memref<10x224xf32, #tpu.memory_space<vmem>>, vector<5x16xf32>,
    %c8 = arith.constant 8 : index
    %c0_41 = arith.constant 0 : index
    %45 = tpu.strided_load %arg7[%c8, %c0_41] {strides = array<i32: 4, 1>} : memref<64x16xf32, #tpu.memory_space<vmem>>, vector<5x16xf32>
    %c0_42 = arith.constant 0 : index
    %c128 = arith.constant 128 : index
    %46 = vector.load %arg8[%c0_42, %c128] : memref<10x224xf32, #tpu.memory_space<vmem>>, vector<5x16xf32>
    tpu.vector_store %arg8[%c0_42, %c128], %45 {strides = array<i32>} : memref<10x224xf32, #tpu.memory_space<vmem>>, vector<5x16xf32>,
    %c9 = arith.constant 9 : index
    %c0_43 = arith.constant 0 : index
    %47 = tpu.strided_load %arg7[%c9, %c0_43] {strides = array<i32: 4, 1>} : memref<64x16xf32, #tpu.memory_space<vmem>>, vector<5x16xf32>
    %c0_44 = arith.constant 0 : index
    %c144 = arith.constant 144 : index
    %48 = vector.load %arg8[%c0_44, %c144] : memref<10x224xf32, #tpu.memory_space<vmem>>, vector<5x16xf32>
    tpu.vector_store %arg8[%c0_44, %c144], %47 {strides = array<i32>} : memref<10x224xf32, #tpu.memory_space<vmem>>, vector<5x16xf32>,
    %c10 = arith.constant 10 : index
    %c0_45 = arith.constant 0 : index
    %49 = tpu.strided_load %arg7[%c10, %c0_45] {strides = array<i32: 4, 1>} : memref<64x16xf32, #tpu.memory_space<vmem>>, vector<5x16xf32>
    %c0_46 = arith.constant 0 : index
    %c160 = arith.constant 160 : index
    %50 = vector.load %arg8[%c0_46, %c160] : memref<10x224xf32, #tpu.memory_space<vmem>>, vector<5x16xf32>
    tpu.vector_store %arg8[%c0_46, %c160], %49 {strides = array<i32>} : memref<10x224xf32, #tpu.memory_space<vmem>>, vector<5x16xf32>,
    %c11 = arith.constant 11 : index
    %c0_47 = arith.constant 0 : index
    %51 = tpu.strided_load %arg7[%c11, %c0_47] {strides = array<i32: 4, 1>} : memref<64x16xf32, #tpu.memory_space<vmem>>, vector<5x16xf32>
    %c0_48 = arith.constant 0 : index
    %c176 = arith.constant 176 : index
    %52 = vector.load %arg8[%c0_48, %c176] : memref<10x224xf32, #tpu.memory_space<vmem>>, vector<5x16xf32>
    tpu.vector_store %arg8[%c0_48, %c176], %51 {strides = array<i32>} : memref<10x224xf32, #tpu.memory_space<vmem>>, vector<5x16xf32>,
    %c12 = arith.constant 12 : index
    %c0_49 = arith.constant 0 : index
    %53 = tpu.strided_load %arg7[%c12, %c0_49] {strides = array<i32: 4, 1>} : memref<64x16xf32, #tpu.memory_space<vmem>>, vector<5x16xf32>
    %c0_50 = arith.constant 0 : index
    %c192 = arith.constant 192 : index
    %54 = vector.load %arg8[%c0_50, %c192] : memref<10x224xf32, #tpu.memory_space<vmem>>, vector<5x16xf32>
    tpu.vector_store %arg8[%c0_50, %c192], %53 {strides = array<i32>} : memref<10x224xf32, #tpu.memory_space<vmem>>, vector<5x16xf32>,
    %c13 = arith.constant 13 : index
    %c0_51 = arith.constant 0 : index
    %55 = tpu.strided_load %arg7[%c13, %c0_51] {strides = array<i32: 4, 1>} : memref<64x16xf32, #tpu.memory_space<vmem>>, vector<5x16xf32>
    %c0_52 = arith.constant 0 : index
    %c208 = arith.constant 208 : index
    %56 = vector.load %arg8[%c0_52, %c208] : memref<10x224xf32, #tpu.memory_space<vmem>>, vector<5x16xf32>
    tpu.vector_store %arg8[%c0_52, %c208], %55 {strides = array<i32>} : memref<10x224xf32, #tpu.memory_space<vmem>>, vector<5x16xf32>,
    %c32_53 = arith.constant 32 : index
    %c0_54 = arith.constant 0 : index
    %57 = tpu.strided_load %arg7[%c32_53, %c0_54] {strides = array<i32: 4, 1>} : memref<64x16xf32, #tpu.memory_space<vmem>>, vector<5x16xf32>
    %c5_55 = arith.constant 5 : index
    %c0_56 = arith.constant 0 : index
    %58 = vector.load %arg8[%c5_55, %c0_56] : memref<10x224xf32, #tpu.memory_space<vmem>>, vector<5x16xf32>
    tpu.vector_store %arg8[%c5_55, %c0_56], %57 {strides = array<i32>} : memref<10x224xf32, #tpu.memory_space<vmem>>, vector<5x16xf32>,
    %c33 = arith.constant 33 : index
    %c0_57 = arith.constant 0 : index
    %59 = tpu.strided_load %arg7[%c33, %c0_57] {strides = array<i32: 4, 1>} : memref<64x16xf32, #tpu.memory_space<vmem>>, vector<5x16xf32>
    %c5_58 = arith.constant 5 : index
    %c16_59 = arith.constant 16 : index
    %60 = vector.load %arg8[%c5_58, %c16_59] : memref<10x224xf32, #tpu.memory_space<vmem>>, vector<5x16xf32>
    tpu.vector_store %arg8[%c5_58, %c16_59], %59 {strides = array<i32>} : memref<10x224xf32, #tpu.memory_space<vmem>>, vector<5x16xf32>,
    %c34 = arith.constant 34 : index
    %c0_60 = arith.constant 0 : index
    %61 = tpu.strided_load %arg7[%c34, %c0_60] {strides = array<i32: 4, 1>} : memref<64x16xf32, #tpu.memory_space<vmem>>, vector<5x16xf32>
    %c5_61 = arith.constant 5 : index
    %c32_62 = arith.constant 32 : index
    %62 = vector.load %arg8[%c5_61, %c32_62] : memref<10x224xf32, #tpu.memory_space<vmem>>, vector<5x16xf32>
    tpu.vector_store %arg8[%c5_61, %c32_62], %61 {strides = array<i32>} : memref<10x224xf32, #tpu.memory_space<vmem>>, vector<5x16xf32>,
    %c35 = arith.constant 35 : index
    %c0_63 = arith.constant 0 : index
    %63 = tpu.strided_load %arg7[%c35, %c0_63] {strides = array<i32: 4, 1>} : memref<64x16xf32, #tpu.memory_space<vmem>>, vector<5x16xf32>
    %c5_64 = arith.constant 5 : index
    %c48_65 = arith.constant 48 : index
    %64 = vector.load %arg8[%c5_64, %c48_65] : memref<10x224xf32, #tpu.memory_space<vmem>>, vector<5x16xf32>
    tpu.vector_store %arg8[%c5_64, %c48_65], %63 {strides = array<i32>} : memref<10x224xf32, #tpu.memory_space<vmem>>, vector<5x16xf32>,
    %c36 = arith.constant 36 : index
    %c0_66 = arith.constant 0 : index
    %65 = tpu.strided_load %arg7[%c36, %c0_66] {strides = array<i32: 4, 1>} : memref<64x16xf32, #tpu.memory_space<vmem>>, vector<5x16xf32>
    %c5_67 = arith.constant 5 : index
    %c64_68 = arith.constant 64 : index
    %66 = vector.load %arg8[%c5_67, %c64_68] : memref<10x224xf32, #tpu.memory_space<vmem>>, vector<5x16xf32>
    tpu.vector_store %arg8[%c5_67, %c64_68], %65 {strides = array<i32>} : memref<10x224xf32, #tpu.memory_space<vmem>>, vector<5x16xf32>,
    %c37 = arith.constant 37 : index
    %c0_69 = arith.constant 0 : index
    %67 = tpu.strided_load %arg7[%c37, %c0_69] {strides = array<i32: 4, 1>} : memref<64x16xf32, #tpu.memory_space<vmem>>, vector<5x16xf32>
    %c5_70 = arith.constant 5 : index
    %c80_71 = arith.constant 80 : index
    %68 = vector.load %arg8[%c5_70, %c80_71] : memref<10x224xf32, #tpu.memory_space<vmem>>, vector<5x16xf32>
    tpu.vector_store %arg8[%c5_70, %c80_71], %67 {strides = array<i32>} : memref<10x224xf32, #tpu.memory_space<vmem>>, vector<5x16xf32>,
    %c38 = arith.constant 38 : index
    %c0_72 = arith.constant 0 : index
    %69 = tpu.strided_load %arg7[%c38, %c0_72] {strides = array<i32: 4, 1>} : memref<64x16xf32, #tpu.memory_space<vmem>>, vector<5x16xf32>
    %c5_73 = arith.constant 5 : index
    %c96_74 = arith.constant 96 : index
    %70 = vector.load %arg8[%c5_73, %c96_74] : memref<10x224xf32, #tpu.memory_space<vmem>>, vector<5x16xf32>
    tpu.vector_store %arg8[%c5_73, %c96_74], %69 {strides = array<i32>} : memref<10x224xf32, #tpu.memory_space<vmem>>, vector<5x16xf32>,
    %c39 = arith.constant 39 : index
    %c0_75 = arith.constant 0 : index
    %71 = tpu.strided_load %arg7[%c39, %c0_75] {strides = array<i32: 4, 1>} : memref<64x16xf32, #tpu.memory_space<vmem>>, vector<5x16xf32>
    %c5_76 = arith.constant 5 : index
    %c112_77 = arith.constant 112 : index
    %72 = vector.load %arg8[%c5_76, %c112_77] : memref<10x224xf32, #tpu.memory_space<vmem>>, vector<5x16xf32>
    tpu.vector_store %arg8[%c5_76, %c112_77], %71 {strides = array<i32>} : memref<10x224xf32, #tpu.memory_space<vmem>>, vector<5x16xf32>,
    %c40 = arith.constant 40 : index
    %c0_78 = arith.constant 0 : index
    %73 = tpu.strided_load %arg7[%c40, %c0_78] {strides = array<i32: 4, 1>} : memref<64x16xf32, #tpu.memory_space<vmem>>, vector<5x16xf32>
    %c5_79 = arith.constant 5 : index
    %c128_80 = arith.constant 128 : index
    %74 = vector.load %arg8[%c5_79, %c128_80] : memref<10x224xf32, #tpu.memory_space<vmem>>, vector<5x16xf32>
    tpu.vector_store %arg8[%c5_79, %c128_80], %73 {strides = array<i32>} : memref<10x224xf32, #tpu.memory_space<vmem>>, vector<5x16xf32>,
    %c41 = arith.constant 41 : index
    %c0_81 = arith.constant 0 : index
    %75 = tpu.strided_load %arg7[%c41, %c0_81] {strides = array<i32: 4, 1>} : memref<64x16xf32, #tpu.memory_space<vmem>>, vector<5x16xf32>
    %c5_82 = arith.constant 5 : index
    %c144_83 = arith.constant 144 : index
    %76 = vector.load %arg8[%c5_82, %c144_83] : memref<10x224xf32, #tpu.memory_space<vmem>>, vector<5x16xf32>
    tpu.vector_store %arg8[%c5_82, %c144_83], %75 {strides = array<i32>} : memref<10x224xf32, #tpu.memory_space<vmem>>, vector<5x16xf32>,
    %c42 = arith.constant 42 : index
    %c0_84 = arith.constant 0 : index
    %77 = tpu.strided_load %arg7[%c42, %c0_84] {strides = array<i32: 4, 1>} : memref<64x16xf32, #tpu.memory_space<vmem>>, vector<5x16xf32>
    %c5_85 = arith.constant 5 : index
    %c160_86 = arith.constant 160 : index
    %78 = vector.load %arg8[%c5_85, %c160_86] : memref<10x224xf32, #tpu.memory_space<vmem>>, vector<5x16xf32>
    tpu.vector_store %arg8[%c5_85, %c160_86], %77 {strides = array<i32>} : memref<10x224xf32, #tpu.memory_space<vmem>>, vector<5x16xf32>,
    %c43 = arith.constant 43 : index
    %c0_87 = arith.constant 0 : index
    %79 = tpu.strided_load %arg7[%c43, %c0_87] {strides = array<i32: 4, 1>} : memref<64x16xf32, #tpu.memory_space<vmem>>, vector<5x16xf32>
    %c5_88 = arith.constant 5 : index
    %c176_89 = arith.constant 176 : index
    %80 = vector.load %arg8[%c5_88, %c176_89] : memref<10x224xf32, #tpu.memory_space<vmem>>, vector<5x16xf32>
    tpu.vector_store %arg8[%c5_88, %c176_89], %79 {strides = array<i32>} : memref<10x224xf32, #tpu.memory_space<vmem>>, vector<5x16xf32>,
    %c44 = arith.constant 44 : index
    %c0_90 = arith.constant 0 : index
    %81 = tpu.strided_load %arg7[%c44, %c0_90] {strides = array<i32: 4, 1>} : memref<64x16xf32, #tpu.memory_space<vmem>>, vector<5x16xf32>
    %c5_91 = arith.constant 5 : index
    %c192_92 = arith.constant 192 : index
    %82 = vector.load %arg8[%c5_91, %c192_92] : memref<10x224xf32, #tpu.memory_space<vmem>>, vector<5x16xf32>
    tpu.vector_store %arg8[%c5_91, %c192_92], %81 {strides = array<i32>} : memref<10x224xf32, #tpu.memory_space<vmem>>, vector<5x16xf32>,
    %c45 = arith.constant 45 : index
    %c0_93 = arith.constant 0 : index
    %83 = tpu.strided_load %arg7[%c45, %c0_93] {strides = array<i32: 4, 1>} : memref<64x16xf32, #tpu.memory_space<vmem>>, vector<5x16xf32>
    %c5_94 = arith.constant 5 : index
    %c208_95 = arith.constant 208 : index
    %84 = vector.load %arg8[%c5_94, %c208_95] : memref<10x224xf32, #tpu.memory_space<vmem>>, vector<5x16xf32>
    tpu.vector_store %arg8[%c5_94, %c208_95], %83 {strides = array<i32>} : memref<10x224xf32, #tpu.memory_space<vmem>>, vector<5x16xf32>,
    %c0_96 = arith.constant 0 : index
    %c0_97 = arith.constant 0 : index
    %85 = vector.load %arg5[%c0_96, %c0_97] : memref<392x128xf32, #tpu.memory_space<vmem>>, vector<224x96xf32>
    %c224 = arith.constant 224 : index
    %c0_98 = arith.constant 0 : index
    %86 = vector.load %arg5[%c224, %c0_98] : memref<392x128xf32, #tpu.memory_space<vmem>>, vector<1x96xf32>
    %c0_99 = arith.constant 0 : index
    %c0_100 = arith.constant 0 : index
    %87 = vector.load %arg8[%c0_99, %c0_100] : memref<10x224xf32, #tpu.memory_space<vmem>>, vector<10x224xf32>
    %cst_101 = arith.constant dense<0.000000e+00> : vector<10x96xf32>
    %88 = tpu.matmul %87, %85, %cst_101 {dimension_numbers = #tpu.dot_dimension_numbers<[1], [0], [0], [1], [0, 0, 1, 1], [], []>} : vector<10x224xf32>, vector<224x96xf32>, vector<10x96xf32> -> vector<10x96xf32>
    %89 = vector.broadcast %86 : vector<1x96xf32> to vector<10x96xf32>
    %90 = arith.addf %88, %89 : vector<10x96xf32>
    %c0_102 = arith.constant 0 : index
    %c0_103 = arith.constant 0 : index
    %91 = vector.load %arg9[%c0_102, %c0_103] : memref<10x96xf32, #tpu.memory_space<vmem>>, vector<10x96xf32>
    tpu.vector_store %arg9[%c0_102, %c0_103], %90 {strides = array<i32>} : memref<10x96xf32, #tpu.memory_space<vmem>>, vector<10x96xf32>,
    %c272 = arith.constant 272 : index
    %c0_104 = arith.constant 0 : index
    %92 = vector.load %arg5[%c272, %c0_104] : memref<392x128xf32, #tpu.memory_space<vmem>>, vector<32x96xf32>
    %c304 = arith.constant 304 : index
    %c0_105 = arith.constant 0 : index
    %93 = vector.load %arg5[%c304, %c0_105] : memref<392x128xf32, #tpu.memory_space<vmem>>, vector<1x96xf32>
    %cst_106 = arith.constant 0.000000e+00 : f32
    %94 = vector.broadcast %cst_106 : f32 to vector<2x32xf32>
    %c0_107 = arith.constant 0 : index
    %c0_108 = arith.constant 0 : index
    %95 = tpu.strided_load %arg9[%c0_107, %c0_108] {strides = array<i32: 5, 1>} : memref<10x96xf32, #tpu.memory_space<vmem>>, vector<2x96xf32>
    %cst_109 = arith.constant dense<0.000000e+00> : vector<2x96xf32>
    %96 = tpu.matmul %94, %92, %cst_109 {dimension_numbers = #tpu.dot_dimension_numbers<[1], [0], [0], [1], [0, 0, 1, 1], [], []>} : vector<2x32xf32>, vector<32x96xf32>, vector<2x96xf32> -> vector<2x96xf32>
    %97 = vector.broadcast %93 : vector<1x96xf32> to vector<2x96xf32>
    %98 = arith.addf %96, %97 : vector<2x96xf32>
    %99 = vector.extract_strided_slice %95 {offsets = [0, 0], sizes = [2, 32], strides = [1, 1]} : vector<2x96xf32> to vector<2x32xf32>
    %100 = vector.extract_strided_slice %98 {offsets = [0, 0], sizes = [2, 32], strides = [1, 1]} : vector<2x96xf32> to vector<2x32xf32>
    %101 = arith.addf %99, %100 : vector<2x32xf32>
    %102 = arith.negf %101 : vector<2x32xf32>
    %103 = math.exp %102 : vector<2x32xf32>
    %cst_110 = arith.constant 1.000000e+00 : f32
    %104 = vector.broadcast %cst_110 : f32 to vector<2x32xf32>
    %105 = arith.addf %104, %103 : vector<2x32xf32>
    %106 = arith.divf %104, %105 : vector<2x32xf32>
    %107 = vector.extract_strided_slice %95 {offsets = [0, 32], sizes = [2, 32], strides = [1, 1]} : vector<2x96xf32> to vector<2x32xf32>
    %108 = vector.extract_strided_slice %98 {offsets = [0, 32], sizes = [2, 32], strides = [1, 1]} : vector<2x96xf32> to vector<2x32xf32>
    %109 = arith.addf %107, %108 : vector<2x32xf32>
    %110 = arith.negf %109 : vector<2x32xf32>
    %111 = math.exp %110 : vector<2x32xf32>
    %cst_111 = arith.constant 1.000000e+00 : f32
    %112 = vector.broadcast %cst_111 : f32 to vector<2x32xf32>
    %113 = arith.addf %112, %111 : vector<2x32xf32>
    %114 = arith.divf %112, %113 : vector<2x32xf32>
    %115 = vector.extract_strided_slice %95 {offsets = [0, 64], sizes = [2, 32], strides = [1, 1]} : vector<2x96xf32> to vector<2x32xf32>
    %116 = vector.extract_strided_slice %98 {offsets = [0, 64], sizes = [2, 32], strides = [1, 1]} : vector<2x96xf32> to vector<2x32xf32>
    %117 = arith.mulf %106, %116 : vector<2x32xf32>
    %118 = arith.addf %115, %117 : vector<2x32xf32>
    %119 = math.tanh %118 : vector<2x32xf32>
    %cst_112 = arith.constant 1.000000e+00 : f32
    %120 = vector.broadcast %cst_112 : f32 to vector<2x32xf32>
    %121 = arith.subf %120, %114 : vector<2x32xf32>
    %122 = arith.mulf %121, %119 : vector<2x32xf32>
    %123 = arith.mulf %114, %94 : vector<2x32xf32>
    %124 = arith.addf %122, %123 : vector<2x32xf32>
    %c0_113 = arith.constant 0 : index
    %c0_114 = arith.constant 0 : index
    %125 = vector.load %arg10[%c0_113, %c0_114] : memref<10x32xf32, #tpu.memory_space<vmem>>, vector<2x32xf32>
    tpu.vector_store %arg10[%c0_113, %c0_114], %124 {strides = array<i32>} : memref<10x32xf32, #tpu.memory_space<vmem>>, vector<2x32xf32>,
    %c1_115 = arith.constant 1 : index
    %c0_116 = arith.constant 0 : index
    %126 = tpu.strided_load %arg9[%c1_115, %c0_116] {strides = array<i32: 5, 1>} : memref<10x96xf32, #tpu.memory_space<vmem>>, vector<2x96xf32>
    %cst_117 = arith.constant dense<0.000000e+00> : vector<2x96xf32>
    %127 = tpu.matmul %124, %92, %cst_117 {dimension_numbers = #tpu.dot_dimension_numbers<[1], [0], [0], [1], [0, 0, 1, 1], [], []>} : vector<2x32xf32>, vector<32x96xf32>, vector<2x96xf32> -> vector<2x96xf32>
    %128 = vector.broadcast %93 : vector<1x96xf32> to vector<2x96xf32>
    %129 = arith.addf %127, %128 : vector<2x96xf32>
    %130 = vector.extract_strided_slice %126 {offsets = [0, 0], sizes = [2, 32], strides = [1, 1]} : vector<2x96xf32> to vector<2x32xf32>
    %131 = vector.extract_strided_slice %129 {offsets = [0, 0], sizes = [2, 32], strides = [1, 1]} : vector<2x96xf32> to vector<2x32xf32>
    %132 = arith.addf %130, %131 : vector<2x32xf32>
    %133 = arith.negf %132 : vector<2x32xf32>
    %134 = math.exp %133 : vector<2x32xf32>
    %cst_118 = arith.constant 1.000000e+00 : f32
    %135 = vector.broadcast %cst_118 : f32 to vector<2x32xf32>
    %136 = arith.addf %135, %134 : vector<2x32xf32>
    %137 = arith.divf %135, %136 : vector<2x32xf32>
    %138 = vector.extract_strided_slice %126 {offsets = [0, 32], sizes = [2, 32], strides = [1, 1]} : vector<2x96xf32> to vector<2x32xf32>
    %139 = vector.extract_strided_slice %129 {offsets = [0, 32], sizes = [2, 32], strides = [1, 1]} : vector<2x96xf32> to vector<2x32xf32>
    %140 = arith.addf %138, %139 : vector<2x32xf32>
    %141 = arith.negf %140 : vector<2x32xf32>
    %142 = math.exp %141 : vector<2x32xf32>
    %cst_119 = arith.constant 1.000000e+00 : f32
    %143 = vector.broadcast %cst_119 : f32 to vector<2x32xf32>
    %144 = arith.addf %143, %142 : vector<2x32xf32>
    %145 = arith.divf %143, %144 : vector<2x32xf32>
    %146 = vector.extract_strided_slice %126 {offsets = [0, 64], sizes = [2, 32], strides = [1, 1]} : vector<2x96xf32> to vector<2x32xf32>
    %147 = vector.extract_strided_slice %129 {offsets = [0, 64], sizes = [2, 32], strides = [1, 1]} : vector<2x96xf32> to vector<2x32xf32>
    %148 = arith.mulf %137, %147 : vector<2x32xf32>
    %149 = arith.addf %146, %148 : vector<2x32xf32>
    %150 = math.tanh %149 : vector<2x32xf32>
    %cst_120 = arith.constant 1.000000e+00 : f32
    %151 = vector.broadcast %cst_120 : f32 to vector<2x32xf32>
    %152 = arith.subf %151, %145 : vector<2x32xf32>
    %153 = arith.mulf %152, %150 : vector<2x32xf32>
    %154 = arith.mulf %145, %124 : vector<2x32xf32>
    %155 = arith.addf %153, %154 : vector<2x32xf32>
    %c2_121 = arith.constant 2 : index
    %c0_122 = arith.constant 0 : index
    %156 = vector.load %arg10[%c2_121, %c0_122] : memref<10x32xf32, #tpu.memory_space<vmem>>, vector<2x32xf32>
    tpu.vector_store %arg10[%c2_121, %c0_122], %155 {strides = array<i32>} : memref<10x32xf32, #tpu.memory_space<vmem>>, vector<2x32xf32>,
    %c2_123 = arith.constant 2 : index
    %c0_124 = arith.constant 0 : index
    %157 = tpu.strided_load %arg9[%c2_123, %c0_124] {strides = array<i32: 5, 1>} : memref<10x96xf32, #tpu.memory_space<vmem>>, vector<2x96xf32>
    %cst_125 = arith.constant dense<0.000000e+00> : vector<2x96xf32>
    %158 = tpu.matmul %155, %92, %cst_125 {dimension_numbers = #tpu.dot_dimension_numbers<[1], [0], [0], [1], [0, 0, 1, 1], [], []>} : vector<2x32xf32>, vector<32x96xf32>, vector<2x96xf32> -> vector<2x96xf32>
    %159 = vector.broadcast %93 : vector<1x96xf32> to vector<2x96xf32>
    %160 = arith.addf %158, %159 : vector<2x96xf32>
    %161 = vector.extract_strided_slice %157 {offsets = [0, 0], sizes = [2, 32], strides = [1, 1]} : vector<2x96xf32> to vector<2x32xf32>
    %162 = vector.extract_strided_slice %160 {offsets = [0, 0], sizes = [2, 32], strides = [1, 1]} : vector<2x96xf32> to vector<2x32xf32>
    %163 = arith.addf %161, %162 : vector<2x32xf32>
    %164 = arith.negf %163 : vector<2x32xf32>
    %165 = math.exp %164 : vector<2x32xf32>
    %cst_126 = arith.constant 1.000000e+00 : f32
    %166 = vector.broadcast %cst_126 : f32 to vector<2x32xf32>
    %167 = arith.addf %166, %165 : vector<2x32xf32>
    %168 = arith.divf %166, %167 : vector<2x32xf32>
    %169 = vector.extract_strided_slice %157 {offsets = [0, 32], sizes = [2, 32], strides = [1, 1]} : vector<2x96xf32> to vector<2x32xf32>
    %170 = vector.extract_strided_slice %160 {offsets = [0, 32], sizes = [2, 32], strides = [1, 1]} : vector<2x96xf32> to vector<2x32xf32>
    %171 = arith.addf %169, %170 : vector<2x32xf32>
    %172 = arith.negf %171 : vector<2x32xf32>
    %173 = math.exp %172 : vector<2x32xf32>
    %cst_127 = arith.constant 1.000000e+00 : f32
    %174 = vector.broadcast %cst_127 : f32 to vector<2x32xf32>
    %175 = arith.addf %174, %173 : vector<2x32xf32>
    %176 = arith.divf %174, %175 : vector<2x32xf32>
    %177 = vector.extract_strided_slice %157 {offsets = [0, 64], sizes = [2, 32], strides = [1, 1]} : vector<2x96xf32> to vector<2x32xf32>
    %178 = vector.extract_strided_slice %160 {offsets = [0, 64], sizes = [2, 32], strides = [1, 1]} : vector<2x96xf32> to vector<2x32xf32>
    %179 = arith.mulf %168, %178 : vector<2x32xf32>
    %180 = arith.addf %177, %179 : vector<2x32xf32>
    %181 = math.tanh %180 : vector<2x32xf32>
    %cst_128 = arith.constant 1.000000e+00 : f32
    %182 = vector.broadcast %cst_128 : f32 to vector<2x32xf32>
    %183 = arith.subf %182, %176 : vector<2x32xf32>
    %184 = arith.mulf %183, %181 : vector<2x32xf32>
    %185 = arith.mulf %176, %155 : vector<2x32xf32>
    %186 = arith.addf %184, %185 : vector<2x32xf32>
    %c4_129 = arith.constant 4 : index
    %c0_130 = arith.constant 0 : index
    %187 = vector.load %arg10[%c4_129, %c0_130] : memref<10x32xf32, #tpu.memory_space<vmem>>, vector<2x32xf32>
    tpu.vector_store %arg10[%c4_129, %c0_130], %186 {strides = array<i32>} : memref<10x32xf32, #tpu.memory_space<vmem>>, vector<2x32xf32>,
    %c3_131 = arith.constant 3 : index
    %c0_132 = arith.constant 0 : index
    %188 = tpu.strided_load %arg9[%c3_131, %c0_132] {strides = array<i32: 5, 1>} : memref<10x96xf32, #tpu.memory_space<vmem>>, vector<2x96xf32>
    %cst_133 = arith.constant dense<0.000000e+00> : vector<2x96xf32>
    %189 = tpu.matmul %186, %92, %cst_133 {dimension_numbers = #tpu.dot_dimension_numbers<[1], [0], [0], [1], [0, 0, 1, 1], [], []>} : vector<2x32xf32>, vector<32x96xf32>, vector<2x96xf32> -> vector<2x96xf32>
    %190 = vector.broadcast %93 : vector<1x96xf32> to vector<2x96xf32>
    %191 = arith.addf %189, %190 : vector<2x96xf32>
    %192 = vector.extract_strided_slice %188 {offsets = [0, 0], sizes = [2, 32], strides = [1, 1]} : vector<2x96xf32> to vector<2x32xf32>
    %193 = vector.extract_strided_slice %191 {offsets = [0, 0], sizes = [2, 32], strides = [1, 1]} : vector<2x96xf32> to vector<2x32xf32>
    %194 = arith.addf %192, %193 : vector<2x32xf32>
    %195 = arith.negf %194 : vector<2x32xf32>
    %196 = math.exp %195 : vector<2x32xf32>
    %cst_134 = arith.constant 1.000000e+00 : f32
    %197 = vector.broadcast %cst_134 : f32 to vector<2x32xf32>
    %198 = arith.addf %197, %196 : vector<2x32xf32>
    %199 = arith.divf %197, %198 : vector<2x32xf32>
    %200 = vector.extract_strided_slice %188 {offsets = [0, 32], sizes = [2, 32], strides = [1, 1]} : vector<2x96xf32> to vector<2x32xf32>
    %201 = vector.extract_strided_slice %191 {offsets = [0, 32], sizes = [2, 32], strides = [1, 1]} : vector<2x96xf32> to vector<2x32xf32>
    %202 = arith.addf %200, %201 : vector<2x32xf32>
    %203 = arith.negf %202 : vector<2x32xf32>
    %204 = math.exp %203 : vector<2x32xf32>
    %cst_135 = arith.constant 1.000000e+00 : f32
    %205 = vector.broadcast %cst_135 : f32 to vector<2x32xf32>
    %206 = arith.addf %205, %204 : vector<2x32xf32>
    %207 = arith.divf %205, %206 : vector<2x32xf32>
    %208 = vector.extract_strided_slice %188 {offsets = [0, 64], sizes = [2, 32], strides = [1, 1]} : vector<2x96xf32> to vector<2x32xf32>
    %209 = vector.extract_strided_slice %191 {offsets = [0, 64], sizes = [2, 32], strides = [1, 1]} : vector<2x96xf32> to vector<2x32xf32>
    %210 = arith.mulf %199, %209 : vector<2x32xf32>
    %211 = arith.addf %208, %210 : vector<2x32xf32>
    %212 = math.tanh %211 : vector<2x32xf32>
    %cst_136 = arith.constant 1.000000e+00 : f32
    %213 = vector.broadcast %cst_136 : f32 to vector<2x32xf32>
    %214 = arith.subf %213, %207 : vector<2x32xf32>
    %215 = arith.mulf %214, %212 : vector<2x32xf32>
    %216 = arith.mulf %207, %186 : vector<2x32xf32>
    %217 = arith.addf %215, %216 : vector<2x32xf32>
    %c6_137 = arith.constant 6 : index
    %c0_138 = arith.constant 0 : index
    %218 = vector.load %arg10[%c6_137, %c0_138] : memref<10x32xf32, #tpu.memory_space<vmem>>, vector<2x32xf32>
    tpu.vector_store %arg10[%c6_137, %c0_138], %217 {strides = array<i32>} : memref<10x32xf32, #tpu.memory_space<vmem>>, vector<2x32xf32>,
    %c4_139 = arith.constant 4 : index
    %c0_140 = arith.constant 0 : index
    %219 = tpu.strided_load %arg9[%c4_139, %c0_140] {strides = array<i32: 5, 1>} : memref<10x96xf32, #tpu.memory_space<vmem>>, vector<2x96xf32>
    %cst_141 = arith.constant dense<0.000000e+00> : vector<2x96xf32>
    %220 = tpu.matmul %217, %92, %cst_141 {dimension_numbers = #tpu.dot_dimension_numbers<[1], [0], [0], [1], [0, 0, 1, 1], [], []>} : vector<2x32xf32>, vector<32x96xf32>, vector<2x96xf32> -> vector<2x96xf32>
    %221 = vector.broadcast %93 : vector<1x96xf32> to vector<2x96xf32>
    %222 = arith.addf %220, %221 : vector<2x96xf32>
    %223 = vector.extract_strided_slice %219 {offsets = [0, 0], sizes = [2, 32], strides = [1, 1]} : vector<2x96xf32> to vector<2x32xf32>
    %224 = vector.extract_strided_slice %222 {offsets = [0, 0], sizes = [2, 32], strides = [1, 1]} : vector<2x96xf32> to vector<2x32xf32>
    %225 = arith.addf %223, %224 : vector<2x32xf32>
    %226 = arith.negf %225 : vector<2x32xf32>
    %227 = math.exp %226 : vector<2x32xf32>
    %cst_142 = arith.constant 1.000000e+00 : f32
    %228 = vector.broadcast %cst_142 : f32 to vector<2x32xf32>
    %229 = arith.addf %228, %227 : vector<2x32xf32>
    %230 = arith.divf %228, %229 : vector<2x32xf32>
    %231 = vector.extract_strided_slice %219 {offsets = [0, 32], sizes = [2, 32], strides = [1, 1]} : vector<2x96xf32> to vector<2x32xf32>
    %232 = vector.extract_strided_slice %222 {offsets = [0, 32], sizes = [2, 32], strides = [1, 1]} : vector<2x96xf32> to vector<2x32xf32>
    %233 = arith.addf %231, %232 : vector<2x32xf32>
    %234 = arith.negf %233 : vector<2x32xf32>
    %235 = math.exp %234 : vector<2x32xf32>
    %cst_143 = arith.constant 1.000000e+00 : f32
    %236 = vector.broadcast %cst_143 : f32 to vector<2x32xf32>
    %237 = arith.addf %236, %235 : vector<2x32xf32>
    %238 = arith.divf %236, %237 : vector<2x32xf32>
    %239 = vector.extract_strided_slice %219 {offsets = [0, 64], sizes = [2, 32], strides = [1, 1]} : vector<2x96xf32> to vector<2x32xf32>
    %240 = vector.extract_strided_slice %222 {offsets = [0, 64], sizes = [2, 32], strides = [1, 1]} : vector<2x96xf32> to vector<2x32xf32>
    %241 = arith.mulf %230, %240 : vector<2x32xf32>
    %242 = arith.addf %239, %241 : vector<2x32xf32>
    %243 = math.tanh %242 : vector<2x32xf32>
    %cst_144 = arith.constant 1.000000e+00 : f32
    %244 = vector.broadcast %cst_144 : f32 to vector<2x32xf32>
    %245 = arith.subf %244, %238 : vector<2x32xf32>
    %246 = arith.mulf %245, %243 : vector<2x32xf32>
    %247 = arith.mulf %238, %217 : vector<2x32xf32>
    %248 = arith.addf %246, %247 : vector<2x32xf32>
    %c8_145 = arith.constant 8 : index
    %c0_146 = arith.constant 0 : index
    %249 = vector.load %arg10[%c8_145, %c0_146] : memref<10x32xf32, #tpu.memory_space<vmem>>, vector<2x32xf32>
    tpu.vector_store %arg10[%c8_145, %c0_146], %248 {strides = array<i32>} : memref<10x32xf32, #tpu.memory_space<vmem>>, vector<2x32xf32>,
    %c312 = arith.constant 312 : index
    %c0_147 = arith.constant 0 : index
    %250 = vector.load %arg5[%c312, %c0_147] : memref<392x128xf32, #tpu.memory_space<vmem>>, vector<32x96xf32>
    %c344 = arith.constant 344 : index
    %c0_148 = arith.constant 0 : index
    %251 = vector.load %arg5[%c344, %c0_148] : memref<392x128xf32, #tpu.memory_space<vmem>>, vector<1x96xf32>
    %c232 = arith.constant 232 : index
    %c0_149 = arith.constant 0 : index
    %252 = vector.load %arg5[%c232, %c0_149] : memref<392x128xf32, #tpu.memory_space<vmem>>, vector<32x96xf32>
    %c264 = arith.constant 264 : index
    %c0_150 = arith.constant 0 : index
    %253 = vector.load %arg5[%c264, %c0_150] : memref<392x128xf32, #tpu.memory_space<vmem>>, vector<1x96xf32>
    %c0_151 = arith.constant 0 : index
    %c0_152 = arith.constant 0 : index
    %254 = vector.load %arg10[%c0_151, %c0_152] : memref<10x32xf32, #tpu.memory_space<vmem>>, vector<10x32xf32>
    %cst_153 = arith.constant dense<0.000000e+00> : vector<10x96xf32>
    %255 = tpu.matmul %254, %252, %cst_153 {dimension_numbers = #tpu.dot_dimension_numbers<[1], [0], [0], [1], [0, 0, 1, 1], [], []>} : vector<10x32xf32>, vector<32x96xf32>, vector<10x96xf32> -> vector<10x96xf32>
    %256 = vector.broadcast %253 : vector<1x96xf32> to vector<10x96xf32>
    %257 = arith.addf %255, %256 : vector<10x96xf32>
    %c0_154 = arith.constant 0 : index
    %c0_155 = arith.constant 0 : index
    %258 = vector.load %arg9[%c0_154, %c0_155] : memref<10x96xf32, #tpu.memory_space<vmem>>, vector<10x96xf32>
    tpu.vector_store %arg9[%c0_154, %c0_155], %257 {strides = array<i32>} : memref<10x96xf32, #tpu.memory_space<vmem>>, vector<10x96xf32>,
    %cst_156 = arith.constant 0.000000e+00 : f32
    %259 = vector.broadcast %cst_156 : f32 to vector<2x32xf32>
    %c0_157 = arith.constant 0 : index
    %c0_158 = arith.constant 0 : index
    %260 = vector.load %arg9[%c0_157, %c0_158] : memref<10x96xf32, #tpu.memory_space<vmem>>, vector<2x96xf32>
    %cst_159 = arith.constant dense<0.000000e+00> : vector<2x96xf32>
    %261 = tpu.matmul %259, %250, %cst_159 {dimension_numbers = #tpu.dot_dimension_numbers<[1], [0], [0], [1], [0, 0, 1, 1], [], []>} : vector<2x32xf32>, vector<32x96xf32>, vector<2x96xf32> -> vector<2x96xf32>
    %262 = vector.broadcast %251 : vector<1x96xf32> to vector<2x96xf32>
    %263 = arith.addf %261, %262 : vector<2x96xf32>
    %264 = vector.extract_strided_slice %260 {offsets = [0, 0], sizes = [2, 32], strides = [1, 1]} : vector<2x96xf32> to vector<2x32xf32>
    %265 = vector.extract_strided_slice %263 {offsets = [0, 0], sizes = [2, 32], strides = [1, 1]} : vector<2x96xf32> to vector<2x32xf32>
    %266 = arith.addf %264, %265 : vector<2x32xf32>
    %267 = arith.negf %266 : vector<2x32xf32>
    %268 = math.exp %267 : vector<2x32xf32>
    %cst_160 = arith.constant 1.000000e+00 : f32
    %269 = vector.broadcast %cst_160 : f32 to vector<2x32xf32>
    %270 = arith.addf %269, %268 : vector<2x32xf32>
    %271 = arith.divf %269, %270 : vector<2x32xf32>
    %272 = vector.extract_strided_slice %260 {offsets = [0, 32], sizes = [2, 32], strides = [1, 1]} : vector<2x96xf32> to vector<2x32xf32>
    %273 = vector.extract_strided_slice %263 {offsets = [0, 32], sizes = [2, 32], strides = [1, 1]} : vector<2x96xf32> to vector<2x32xf32>
    %274 = arith.addf %272, %273 : vector<2x32xf32>
    %275 = arith.negf %274 : vector<2x32xf32>
    %276 = math.exp %275 : vector<2x32xf32>
    %cst_161 = arith.constant 1.000000e+00 : f32
    %277 = vector.broadcast %cst_161 : f32 to vector<2x32xf32>
    %278 = arith.addf %277, %276 : vector<2x32xf32>
    %279 = arith.divf %277, %278 : vector<2x32xf32>
    %280 = vector.extract_strided_slice %260 {offsets = [0, 64], sizes = [2, 32], strides = [1, 1]} : vector<2x96xf32> to vector<2x32xf32>
    %281 = vector.extract_strided_slice %263 {offsets = [0, 64], sizes = [2, 32], strides = [1, 1]} : vector<2x96xf32> to vector<2x32xf32>
    %282 = arith.mulf %271, %281 : vector<2x32xf32>
    %283 = arith.addf %280, %282 : vector<2x32xf32>
    %284 = math.tanh %283 : vector<2x32xf32>
    %cst_162 = arith.constant 1.000000e+00 : f32
    %285 = vector.broadcast %cst_162 : f32 to vector<2x32xf32>
    %286 = arith.subf %285, %279 : vector<2x32xf32>
    %287 = arith.mulf %286, %284 : vector<2x32xf32>
    %288 = arith.mulf %279, %259 : vector<2x32xf32>
    %289 = arith.addf %287, %288 : vector<2x32xf32>
    %c0_163 = arith.constant 0 : index
    %c0_164 = arith.constant 0 : index
    %290 = vector.load %arg10[%c0_163, %c0_164] : memref<10x32xf32, #tpu.memory_space<vmem>>, vector<2x32xf32>
    tpu.vector_store %arg10[%c0_163, %c0_164], %289 {strides = array<i32>} : memref<10x32xf32, #tpu.memory_space<vmem>>, vector<2x32xf32>,
    %c2_165 = arith.constant 2 : index
    %c0_166 = arith.constant 0 : index
    %291 = vector.load %arg9[%c2_165, %c0_166] : memref<10x96xf32, #tpu.memory_space<vmem>>, vector<2x96xf32>
    %cst_167 = arith.constant dense<0.000000e+00> : vector<2x96xf32>
    %292 = tpu.matmul %289, %250, %cst_167 {dimension_numbers = #tpu.dot_dimension_numbers<[1], [0], [0], [1], [0, 0, 1, 1], [], []>} : vector<2x32xf32>, vector<32x96xf32>, vector<2x96xf32> -> vector<2x96xf32>
    %293 = vector.broadcast %251 : vector<1x96xf32> to vector<2x96xf32>
    %294 = arith.addf %292, %293 : vector<2x96xf32>
    %295 = vector.extract_strided_slice %291 {offsets = [0, 0], sizes = [2, 32], strides = [1, 1]} : vector<2x96xf32> to vector<2x32xf32>
    %296 = vector.extract_strided_slice %294 {offsets = [0, 0], sizes = [2, 32], strides = [1, 1]} : vector<2x96xf32> to vector<2x32xf32>
    %297 = arith.addf %295, %296 : vector<2x32xf32>
    %298 = arith.negf %297 : vector<2x32xf32>
    %299 = math.exp %298 : vector<2x32xf32>
    %cst_168 = arith.constant 1.000000e+00 : f32
    %300 = vector.broadcast %cst_168 : f32 to vector<2x32xf32>
    %301 = arith.addf %300, %299 : vector<2x32xf32>
    %302 = arith.divf %300, %301 : vector<2x32xf32>
    %303 = vector.extract_strided_slice %291 {offsets = [0, 32], sizes = [2, 32], strides = [1, 1]} : vector<2x96xf32> to vector<2x32xf32>
    %304 = vector.extract_strided_slice %294 {offsets = [0, 32], sizes = [2, 32], strides = [1, 1]} : vector<2x96xf32> to vector<2x32xf32>
    %305 = arith.addf %303, %304 : vector<2x32xf32>
    %306 = arith.negf %305 : vector<2x32xf32>
    %307 = math.exp %306 : vector<2x32xf32>
    %cst_169 = arith.constant 1.000000e+00 : f32
    %308 = vector.broadcast %cst_169 : f32 to vector<2x32xf32>
    %309 = arith.addf %308, %307 : vector<2x32xf32>
    %310 = arith.divf %308, %309 : vector<2x32xf32>
    %311 = vector.extract_strided_slice %291 {offsets = [0, 64], sizes = [2, 32], strides = [1, 1]} : vector<2x96xf32> to vector<2x32xf32>
    %312 = vector.extract_strided_slice %294 {offsets = [0, 64], sizes = [2, 32], strides = [1, 1]} : vector<2x96xf32> to vector<2x32xf32>
    %313 = arith.mulf %302, %312 : vector<2x32xf32>
    %314 = arith.addf %311, %313 : vector<2x32xf32>
    %315 = math.tanh %314 : vector<2x32xf32>
    %cst_170 = arith.constant 1.000000e+00 : f32
    %316 = vector.broadcast %cst_170 : f32 to vector<2x32xf32>
    %317 = arith.subf %316, %310 : vector<2x32xf32>
    %318 = arith.mulf %317, %315 : vector<2x32xf32>
    %319 = arith.mulf %310, %289 : vector<2x32xf32>
    %320 = arith.addf %318, %319 : vector<2x32xf32>
    %c2_171 = arith.constant 2 : index
    %c0_172 = arith.constant 0 : index
    %321 = vector.load %arg10[%c2_171, %c0_172] : memref<10x32xf32, #tpu.memory_space<vmem>>, vector<2x32xf32>
    tpu.vector_store %arg10[%c2_171, %c0_172], %320 {strides = array<i32>} : memref<10x32xf32, #tpu.memory_space<vmem>>, vector<2x32xf32>,
    %c4_173 = arith.constant 4 : index
    %c0_174 = arith.constant 0 : index
    %322 = vector.load %arg9[%c4_173, %c0_174] : memref<10x96xf32, #tpu.memory_space<vmem>>, vector<2x96xf32>
    %cst_175 = arith.constant dense<0.000000e+00> : vector<2x96xf32>
    %323 = tpu.matmul %320, %250, %cst_175 {dimension_numbers = #tpu.dot_dimension_numbers<[1], [0], [0], [1], [0, 0, 1, 1], [], []>} : vector<2x32xf32>, vector<32x96xf32>, vector<2x96xf32> -> vector<2x96xf32>
    %324 = vector.broadcast %251 : vector<1x96xf32> to vector<2x96xf32>
    %325 = arith.addf %323, %324 : vector<2x96xf32>
    %326 = vector.extract_strided_slice %322 {offsets = [0, 0], sizes = [2, 32], strides = [1, 1]} : vector<2x96xf32> to vector<2x32xf32>
    %327 = vector.extract_strided_slice %325 {offsets = [0, 0], sizes = [2, 32], strides = [1, 1]} : vector<2x96xf32> to vector<2x32xf32>
    %328 = arith.addf %326, %327 : vector<2x32xf32>
    %329 = arith.negf %328 : vector<2x32xf32>
    %330 = math.exp %329 : vector<2x32xf32>
    %cst_176 = arith.constant 1.000000e+00 : f32
    %331 = vector.broadcast %cst_176 : f32 to vector<2x32xf32>
    %332 = arith.addf %331, %330 : vector<2x32xf32>
    %333 = arith.divf %331, %332 : vector<2x32xf32>
    %334 = vector.extract_strided_slice %322 {offsets = [0, 32], sizes = [2, 32], strides = [1, 1]} : vector<2x96xf32> to vector<2x32xf32>
    %335 = vector.extract_strided_slice %325 {offsets = [0, 32], sizes = [2, 32], strides = [1, 1]} : vector<2x96xf32> to vector<2x32xf32>
    %336 = arith.addf %334, %335 : vector<2x32xf32>
    %337 = arith.negf %336 : vector<2x32xf32>
    %338 = math.exp %337 : vector<2x32xf32>
    %cst_177 = arith.constant 1.000000e+00 : f32
    %339 = vector.broadcast %cst_177 : f32 to vector<2x32xf32>
    %340 = arith.addf %339, %338 : vector<2x32xf32>
    %341 = arith.divf %339, %340 : vector<2x32xf32>
    %342 = vector.extract_strided_slice %322 {offsets = [0, 64], sizes = [2, 32], strides = [1, 1]} : vector<2x96xf32> to vector<2x32xf32>
    %343 = vector.extract_strided_slice %325 {offsets = [0, 64], sizes = [2, 32], strides = [1, 1]} : vector<2x96xf32> to vector<2x32xf32>
    %344 = arith.mulf %333, %343 : vector<2x32xf32>
    %345 = arith.addf %342, %344 : vector<2x32xf32>
    %346 = math.tanh %345 : vector<2x32xf32>
    %cst_178 = arith.constant 1.000000e+00 : f32
    %347 = vector.broadcast %cst_178 : f32 to vector<2x32xf32>
    %348 = arith.subf %347, %341 : vector<2x32xf32>
    %349 = arith.mulf %348, %346 : vector<2x32xf32>
    %350 = arith.mulf %341, %320 : vector<2x32xf32>
    %351 = arith.addf %349, %350 : vector<2x32xf32>
    %c4_179 = arith.constant 4 : index
    %c0_180 = arith.constant 0 : index
    %352 = vector.load %arg10[%c4_179, %c0_180] : memref<10x32xf32, #tpu.memory_space<vmem>>, vector<2x32xf32>
    tpu.vector_store %arg10[%c4_179, %c0_180], %351 {strides = array<i32>} : memref<10x32xf32, #tpu.memory_space<vmem>>, vector<2x32xf32>,
    %c6_181 = arith.constant 6 : index
    %c0_182 = arith.constant 0 : index
    %353 = vector.load %arg9[%c6_181, %c0_182] : memref<10x96xf32, #tpu.memory_space<vmem>>, vector<2x96xf32>
    %cst_183 = arith.constant dense<0.000000e+00> : vector<2x96xf32>
    %354 = tpu.matmul %351, %250, %cst_183 {dimension_numbers = #tpu.dot_dimension_numbers<[1], [0], [0], [1], [0, 0, 1, 1], [], []>} : vector<2x32xf32>, vector<32x96xf32>, vector<2x96xf32> -> vector<2x96xf32>
    %355 = vector.broadcast %251 : vector<1x96xf32> to vector<2x96xf32>
    %356 = arith.addf %354, %355 : vector<2x96xf32>
    %357 = vector.extract_strided_slice %353 {offsets = [0, 0], sizes = [2, 32], strides = [1, 1]} : vector<2x96xf32> to vector<2x32xf32>
    %358 = vector.extract_strided_slice %356 {offsets = [0, 0], sizes = [2, 32], strides = [1, 1]} : vector<2x96xf32> to vector<2x32xf32>
    %359 = arith.addf %357, %358 : vector<2x32xf32>
    %360 = arith.negf %359 : vector<2x32xf32>
    %361 = math.exp %360 : vector<2x32xf32>
    %cst_184 = arith.constant 1.000000e+00 : f32
    %362 = vector.broadcast %cst_184 : f32 to vector<2x32xf32>
    %363 = arith.addf %362, %361 : vector<2x32xf32>
    %364 = arith.divf %362, %363 : vector<2x32xf32>
    %365 = vector.extract_strided_slice %353 {offsets = [0, 32], sizes = [2, 32], strides = [1, 1]} : vector<2x96xf32> to vector<2x32xf32>
    %366 = vector.extract_strided_slice %356 {offsets = [0, 32], sizes = [2, 32], strides = [1, 1]} : vector<2x96xf32> to vector<2x32xf32>
    %367 = arith.addf %365, %366 : vector<2x32xf32>
    %368 = arith.negf %367 : vector<2x32xf32>
    %369 = math.exp %368 : vector<2x32xf32>
    %cst_185 = arith.constant 1.000000e+00 : f32
    %370 = vector.broadcast %cst_185 : f32 to vector<2x32xf32>
    %371 = arith.addf %370, %369 : vector<2x32xf32>
    %372 = arith.divf %370, %371 : vector<2x32xf32>
    %373 = vector.extract_strided_slice %353 {offsets = [0, 64], sizes = [2, 32], strides = [1, 1]} : vector<2x96xf32> to vector<2x32xf32>
    %374 = vector.extract_strided_slice %356 {offsets = [0, 64], sizes = [2, 32], strides = [1, 1]} : vector<2x96xf32> to vector<2x32xf32>
    %375 = arith.mulf %364, %374 : vector<2x32xf32>
    %376 = arith.addf %373, %375 : vector<2x32xf32>
    %377 = math.tanh %376 : vector<2x32xf32>
    %cst_186 = arith.constant 1.000000e+00 : f32
    %378 = vector.broadcast %cst_186 : f32 to vector<2x32xf32>
    %379 = arith.subf %378, %372 : vector<2x32xf32>
    %380 = arith.mulf %379, %377 : vector<2x32xf32>
    %381 = arith.mulf %372, %351 : vector<2x32xf32>
    %382 = arith.addf %380, %381 : vector<2x32xf32>
    %c6_187 = arith.constant 6 : index
    %c0_188 = arith.constant 0 : index
    %383 = vector.load %arg10[%c6_187, %c0_188] : memref<10x32xf32, #tpu.memory_space<vmem>>, vector<2x32xf32>
    tpu.vector_store %arg10[%c6_187, %c0_188], %382 {strides = array<i32>} : memref<10x32xf32, #tpu.memory_space<vmem>>, vector<2x32xf32>,
    %c8_189 = arith.constant 8 : index
    %c0_190 = arith.constant 0 : index
    %384 = vector.load %arg9[%c8_189, %c0_190] : memref<10x96xf32, #tpu.memory_space<vmem>>, vector<2x96xf32>
    %cst_191 = arith.constant dense<0.000000e+00> : vector<2x96xf32>
    %385 = tpu.matmul %382, %250, %cst_191 {dimension_numbers = #tpu.dot_dimension_numbers<[1], [0], [0], [1], [0, 0, 1, 1], [], []>} : vector<2x32xf32>, vector<32x96xf32>, vector<2x96xf32> -> vector<2x96xf32>
    %386 = vector.broadcast %251 : vector<1x96xf32> to vector<2x96xf32>
    %387 = arith.addf %385, %386 : vector<2x96xf32>
    %388 = vector.extract_strided_slice %384 {offsets = [0, 0], sizes = [2, 32], strides = [1, 1]} : vector<2x96xf32> to vector<2x32xf32>
    %389 = vector.extract_strided_slice %387 {offsets = [0, 0], sizes = [2, 32], strides = [1, 1]} : vector<2x96xf32> to vector<2x32xf32>
    %390 = arith.addf %388, %389 : vector<2x32xf32>
    %391 = arith.negf %390 : vector<2x32xf32>
    %392 = math.exp %391 : vector<2x32xf32>
    %cst_192 = arith.constant 1.000000e+00 : f32
    %393 = vector.broadcast %cst_192 : f32 to vector<2x32xf32>
    %394 = arith.addf %393, %392 : vector<2x32xf32>
    %395 = arith.divf %393, %394 : vector<2x32xf32>
    %396 = vector.extract_strided_slice %384 {offsets = [0, 32], sizes = [2, 32], strides = [1, 1]} : vector<2x96xf32> to vector<2x32xf32>
    %397 = vector.extract_strided_slice %387 {offsets = [0, 32], sizes = [2, 32], strides = [1, 1]} : vector<2x96xf32> to vector<2x32xf32>
    %398 = arith.addf %396, %397 : vector<2x32xf32>
    %399 = arith.negf %398 : vector<2x32xf32>
    %400 = math.exp %399 : vector<2x32xf32>
    %cst_193 = arith.constant 1.000000e+00 : f32
    %401 = vector.broadcast %cst_193 : f32 to vector<2x32xf32>
    %402 = arith.addf %401, %400 : vector<2x32xf32>
    %403 = arith.divf %401, %402 : vector<2x32xf32>
    %404 = vector.extract_strided_slice %384 {offsets = [0, 64], sizes = [2, 32], strides = [1, 1]} : vector<2x96xf32> to vector<2x32xf32>
    %405 = vector.extract_strided_slice %387 {offsets = [0, 64], sizes = [2, 32], strides = [1, 1]} : vector<2x96xf32> to vector<2x32xf32>
    %406 = arith.mulf %395, %405 : vector<2x32xf32>
    %407 = arith.addf %404, %406 : vector<2x32xf32>
    %408 = math.tanh %407 : vector<2x32xf32>
    %cst_194 = arith.constant 1.000000e+00 : f32
    %409 = vector.broadcast %cst_194 : f32 to vector<2x32xf32>
    %410 = arith.subf %409, %403 : vector<2x32xf32>
    %411 = arith.mulf %410, %408 : vector<2x32xf32>
    %412 = arith.mulf %403, %382 : vector<2x32xf32>
    %413 = arith.addf %411, %412 : vector<2x32xf32>
    %c8_195 = arith.constant 8 : index
    %c0_196 = arith.constant 0 : index
    %414 = vector.load %arg10[%c8_195, %c0_196] : memref<10x32xf32, #tpu.memory_space<vmem>>, vector<2x32xf32>
    tpu.vector_store %arg10[%c8_195, %c0_196], %413 {strides = array<i32>} : memref<10x32xf32, #tpu.memory_space<vmem>>, vector<2x32xf32>,
    %c352 = arith.constant 352 : index
    %c0_197 = arith.constant 0 : index
    %415 = vector.load %arg5[%c352, %c0_197] : memref<392x128xf32, #tpu.memory_space<vmem>>, vector<32x128xf32>
    %c384 = arith.constant 384 : index
    %c0_198 = arith.constant 0 : index
    %416 = vector.load %arg5[%c384, %c0_198] : memref<392x128xf32, #tpu.memory_space<vmem>>, vector<1x128xf32>
    %c0_199 = arith.constant 0 : index
    %c0_200 = arith.constant 0 : index
    %417 = vector.load %arg10[%c0_199, %c0_200] : memref<10x32xf32, #tpu.memory_space<vmem>>, vector<10x32xf32>
    %cst_201 = arith.constant dense<0.000000e+00> : vector<10x128xf32>
    %418 = tpu.matmul %417, %415, %cst_201 {dimension_numbers = #tpu.dot_dimension_numbers<[1], [0], [0], [1], [0, 0, 1, 1], [], []>} : vector<10x32xf32>, vector<32x128xf32>, vector<10x128xf32> -> vector<10x128xf32>
    %419 = vector.broadcast %416 : vector<1x128xf32> to vector<10x128xf32>
    %420 = arith.addf %418, %419 : vector<10x128xf32>
    %c0_202 = arith.constant 0 : index
    %c0_203 = arith.constant 0 : index
    %421 = vector.load %arg6[%c0_202, %c0_203] : memref<10x128xf32, #tpu.memory_space<vmem>>, vector<10x128xf32>
    tpu.vector_store %arg6[%c0_202, %c0_203], %420 {strides = array<i32>} : memref<10x128xf32, #tpu.memory_space<vmem>>, vector<10x128xf32>,
    return
  }
  func.func @transform_0(%arg0: i32) -> (i32, i32) {
    %c0_i32 = arith.constant 0 : i32
    %c0_i32_0 = arith.constant 0 : i32
    %c0_i32_1 = arith.constant 0 : i32
    return %c0_i32, %c0_i32_0 : i32, i32
  }
  func.func @transform_1(%arg0: i32) -> (i32, i32) {
    %c0_i32 = arith.constant 0 : i32
    %c0_i32_0 = arith.constant 0 : i32
    %c0_i32_1 = arith.constant 0 : i32
    return %c0_i32, %c0_i32_0 : i32, i32
  }
  func.func @transform_2(%arg0: i32) -> (i32, i32, i32) {
    %c0_i32 = arith.constant 0 : i32
    %c0_i32_0 = arith.constant 0 : i32
    %c0_i32_1 = arith.constant 0 : i32
    %c0_i32_2 = arith.constant 0 : i32
    return %c0_i32, %c0_i32_0, %c0_i32_1 : i32, i32, i32
  }
  func.func @transform_3(%arg0: i32) -> (i32, i32, i32) {
    %c0_i32 = arith.constant 0 : i32
    %c0_i32_0 = arith.constant 0 : i32
    %c0_i32_1 = arith.constant 0 : i32
    %c0_i32_2 = arith.constant 0 : i32
    return %c0_i32, %c0_i32_0, %c0_i32_1 : i32, i32, i32
  }
  func.func @transform_4(%arg0: i32) -> (i32, i32) {
    %c0_i32 = arith.constant 0 : i32
    %c0_i32_0 = arith.constant 0 : i32
    %c0_i32_1 = arith.constant 0 : i32
    return %c0_i32, %c0_i32_0 : i32, i32
  }
  func.func @transform_5(%arg0: i32) -> (i32, i32) {
    %c0_i32 = arith.constant 0 : i32
    %c0_i32_0 = arith.constant 0 : i32
    %c0_i32_1 = arith.constant 0 : i32
    return %c0_i32, %c0_i32_0 : i32, i32
  }
}

</mosaic_0001>

<llo_original>
// kernel: bit_decoder_forward.1
$region0: #{bit_decoder_forward.1}
  #allocation0 [shape = 'u32[]', space=smem, size = 0x4, offset = 0x4, fixed_abs, tag = 'smem constant byte address 0x4 - core index']
  #allocation1 [shape = 'u32[72,128]{1,0:T(1,128)}', space=vmem, size = 0x9000, scoped, tag = 'internal scratch']
  #allocation2 [shape = 'f32[64,16]{1,0:T(8,128)}', space=vmem, size = 0x8000, scoped, tag = 'scratch operand']
  #allocation3 [shape = 'f32[10,224]{1,0:T(8,128)}', space=vmem, size = 0x4000, scoped, tag = 'scratch operand']
  #allocation4 [shape = 'f32[10,96]{1,0:T(8,128)}', space=vmem, size = 0x2000, scoped, tag = 'scratch operand']
  #allocation5 [shape = 'f32[10,32]{1,0:T(8,128)}', space=vmem, size = 0x2000, scoped, tag = 'scratch operand']
  %s0 = inlined_call_operand.vmem [shape: f32[64,112], index: 0, kind: input, shape index: {}]
  %s1 = inlined_call_operand.vmem [shape: f32[112,16], index: 1, kind: input, shape index: {}]
  %s2 = inlined_call_operand.vmem [shape: f32[2,16,16], index: 2, kind: input, shape index: {}]
  %s3 = inlined_call_operand.vmem [shape: f32[2,1,16], index: 3, kind: input, shape index: {}]
  %s4 = inlined_call_operand.hbm [shape: f32[392,128], index: 4, kind: input, shape index: {}]
  %s5 = inlined_call_operand.vmem [shape: f32[10,128], index: 5, kind: output, shape index: {}]
  %s6 = sld [smem:[#allocation0]]
  $region34: #{bit_decoder_forward.1} parent=0
    _
  %s8 = ssub.s32 1, %s6
  %s9 = scalar_select 0, %s8, %s6
  $region1: #{bit_decoder_forward.1} parent=0
    #allocation6 [shape = 'u8[200704]{0}', space=vmem, size = 0x31000, scoped, tag = 'input window, operand 4, single buffered']
    #allocation7 [shape = 's32[1]{0}', space=sflag, size = 0x4, scoped, tag = 'scoped memory for bit_decoder_forward.1']
    %10 = vsyncpa [#allocation7], 0
    // Predicated region
    $region2: #{bit_decoder_forward.1} parent=1 // pred_check
      _
    $region3: #{bit_decoder_forward.1} parent=1 // pred_check_branch
      %12 = sbr.rel (0) target = $region5
    $region4: #{bit_decoder_forward.1} parent=1 // pred_region
      _
    $region5: #{bit_decoder_forward.1} parent=1 // pred_fallthru
      _
    // Predicated region
    $region6: #{bit_decoder_forward.1} parent=1 // pred_check
      _
    $region7: #{bit_decoder_forward.1} parent=1 // pred_check_branch
      %14 = sbr.rel (0) target = $region9
    $region8: #{bit_decoder_forward.1} parent=1 // pred_region
      _
    $region9: #{bit_decoder_forward.1} parent=1 // pred_fallthru
      _
    // Predicated region
    $region10: #{bit_decoder_forward.1} parent=1 // pred_check
      _
    $region11: #{bit_decoder_forward.1} parent=1 // pred_check_branch
      %16 = sbr.rel (0) target = $region13
    $region12: #{bit_decoder_forward.1} parent=1 // pred_region
      _
    $region13: #{bit_decoder_forward.1} parent=1 // pred_fallthru
      _
    // Predicated region
    $region14: #{bit_decoder_forward.1} parent=1 // pred_check
      _
    $region15: #{bit_decoder_forward.1} parent=1 // pred_check_branch
      %18 = sbr.rel (0) target = $region17
    $region16: #{bit_decoder_forward.1} parent=1 // pred_region
      _
    $region17: #{bit_decoder_forward.1} parent=1 // pred_fallthru
      _
    // Predicated region
    $region18: #{bit_decoder_forward.1} parent=1 // pred_check
      _
    $region19: #{bit_decoder_forward.1} parent=1 // pred_check_branch
      %20 = sbr.rel (0) target = $region21
    $region20: #{bit_decoder_forward.1} parent=1 // pred_region
      %22 = vsyncadd [#allocation7], 0
      %s23 = sshll.u32 %s4, 4
      %s24 = int_to_ptr.hbm [resolvable:$true] %s23
      %s25 = sshll.u32 [#allocation6], 4
      %s26 = int_to_ptr.vmem [resolvable:$true] %s25
      %31 = dma.hbm_to_vmem [thread:$0]  %s24, 6272, %s26, [#allocation7], 128, 128, 8
    $region21: #{bit_decoder_forward.1} parent=1 // pred_fallthru
      _
    // Predicated region
    $region22: #{bit_decoder_forward.1} parent=1 // pred_check
      _
    $region23: #{bit_decoder_forward.1} parent=1 // pred_check_branch
      %33 = sbr.rel (0) target = $region25
    $region24: #{bit_decoder_forward.1} parent=1 // pred_region
      %35 = dma.done [#allocation7], 6272
    $region25: #{bit_decoder_forward.1} parent=1 // pred_fallthru
      _
    %v36 = vld [vmem:[%s0] sm:$0xff]
    %v37 = vld [vmem:[%s0 + $0x8] sm:$0xff]
    %v38 = vld [vmem:[%s0 + $0x10] sm:$0xff]
    %v39 = vld [vmem:[%s0 + $0x18] sm:$0xff]
    %v40 = vld [vmem:[%s0 + $0x20] sm:$0xff]
    %v41 = vld [vmem:[%s0 + $0x28] sm:$0xff]
    %v42 = vld [vmem:[%s0 + $0x30] sm:$0xff]
    %v43 = vld [vmem:[%s0 + $0x38] sm:$0xff]
    %v44 = vld [vmem:[%s1] sm:$0xff]
    %v45 = vld [vmem:[%s1 + $0x8] sm:$0xff]
    %v46 = vld [vmem:[%s1 + $0x10] sm:$0xff]
    %v47 = vld [vmem:[%s1 + $0x18] sm:$0xff]
    %v48 = vld [vmem:[%s1 + $0x20] sm:$0xff]
    %v49 = vld [vmem:[%s1 + $0x28] sm:$0xff]
    %v50 = vld [vmem:[%s1 + $0x30] sm:$0xff]
    %v51 = vld [vmem:[%s1 + $0x38] sm:$0xff]
    %v52 = vld [vmem:[%s1 + $0x40] sm:$0xff]
    %v53 = vld [vmem:[%s1 + $0x48] sm:$0xff]
    %v54 = vld [vmem:[%s1 + $0x50] sm:$0xff]
    %v55 = vld [vmem:[%s1 + $0x58] sm:$0xff]
    %v56 = vld [vmem:[%s1 + $0x60] sm:$0xff]
    %v57 = vld [vmem:[%s1 + $0x68] sm:$0xff]
    %vm58 = vcmask 916480
    %v60 = vsel %vm58, %v36, 0
    %v63 = vsel %vm58, %v37, 0
    %v66 = vsel %vm58, %v38, 0
    %v69 = vsel %vm58, %v39, 0
    %v72 = vsel %vm58, %v40, 0
    %v75 = vsel %vm58, %v41, 0
    %v78 = vsel %vm58, %v42, 0
    %v81 = vsel %vm58, %v43, 0
    %83 = vmatpush.msra.mxu0 0.0
    %84 = vmatpush.msra.mxu0 0.0
    %85 = vmatpush.msra.mxu0 %v57
    %86 = vmatpush.msra.mxu0 %v56
    %87 = vmatpush.msra.mxu0 %v55
    %88 = vmatpush.msra.mxu0 %v54
    %89 = vmatpush.msra.mxu0 %v53
    %90 = vmatpush.msra.mxu0 %v52
    %91 = vmatpush.msra.mxu0 %v51
    %92 = vmatpush.msra.mxu0 %v50
    %93 = vmatpush.msra.mxu0 %v49
    %94 = vmatpush.msra.mxu0 %v48
    %95 = vmatpush.msra.mxu0 %v47
    %96 = vmatpush.msra.mxu0 %v46
    %97 = vmatpush.msra.mxu0 %v45
    %98 = vmatpush.msra.mxu0 %v44
    %99 = vmatmul.f32.gmra.mxu0 %v60
    %v100 = vpop.f32.mrf.mxu0
    %v101 = vadd.f32 0.0, %v100
    %102 = vmatmul.f32.gmra.mxu0 %v63
    %v103 = vpop.f32.mrf.mxu0
    %v104 = vadd.f32 0.0, %v103
    %105 = vmatmul.f32.gmra.mxu0 %v66
    %v106 = vpop.f32.mrf.mxu0
    %v107 = vadd.f32 0.0, %v106
    %108 = vmatmul.f32.gmra.mxu0 %v69
    %v109 = vpop.f32.mrf.mxu0
    %v110 = vadd.f32 0.0, %v109
    %111 = vmatmul.f32.gmra.mxu0 %v72
    %v112 = vpop.f32.mrf.mxu0
    %v113 = vadd.f32 0.0, %v112
    %114 = vmatmul.f32.gmra.mxu0 %v75
    %v115 = vpop.f32.mrf.mxu0
    %v116 = vadd.f32 0.0, %v115
    %117 = vmatmul.f32.gmra.mxu0 %v78
    %v118 = vpop.f32.mrf.mxu0
    %v119 = vadd.f32 0.0, %v118
    %120 = vmatmul.f32.gmra.mxu0 %v81
    %v121 = vpop.f32.mrf.mxu0
    %v122 = vadd.f32 0.0, %v121
    %123 = vdwg.mxu0
    %v124 = vld [vmem:[%s2] sm:$0xff]
    %v125 = vld [vmem:[%s2 + $0x8] sm:$0xff]
    %v126 = vld [vmem:[%s3] sm:$0x1]
    %v128 = vperm.slane %v126, 0
    %vm130 = vcmask 130048
    %v132 = vsel %vm130, %v101, 0
    %v135 = vsel %vm130, %v104, 0
    %v138 = vsel %vm130, %v107, 0
    %v141 = vsel %vm130, %v110, 0
    %143 = vmatpush.msra.mxu0 0.0
    %144 = vmatpush.msra.mxu0 0.0
    %145 = vmatpush.msra.mxu0 0.0
    %146 = vmatpush.msra.mxu0 0.0
    %147 = vmatpush.msra.mxu0 0.0
    %148 = vmatpush.msra.mxu0 0.0
    %149 = vmatpush.msra.mxu0 0.0
    %150 = vmatpush.msra.mxu0 0.0
    %151 = vmatpush.msra.mxu0 0.0
    %152 = vmatpush.msra.mxu0 0.0
    %153 = vmatpush.msra.mxu0 0.0
    %154 = vmatpush.msra.mxu0 0.0
    %155 = vmatpush.msra.mxu0 0.0
    %156 = vmatpush.msra.mxu0 0.0
    %157 = vmatpush.msra.mxu0 %v125
    %158 = vmatpush.msra.mxu0 %v124
    %159 = vmatmul.f32.gmra.mxu0 %v132
    %v160 = vpop.f32.mrf.mxu0
    %v161 = vadd.f32 %v128, %v160
    %162 = vmatmul.f32.gmra.mxu0 %v135
    %v163 = vpop.f32.mrf.mxu0
    %v164 = vadd.f32 %v128, %v163
    %165 = vmatmul.f32.gmra.mxu0 %v138
    %v166 = vpop.f32.mrf.mxu0
    %v167 = vadd.f32 %v128, %v166
    %168 = vmatmul.f32.gmra.mxu0 %v141
    %v169 = vpop.f32.mrf.mxu0
    %v170 = vadd.f32 %v128, %v169
    %171 = vdwg.mxu0
    %v172 = vand.u32 2147483647, %v161
    %v173 = vand.u32 2147483647, %v164
    %v174 = vand.u32 2147483647, %v167
    %v175 = vand.u32 2147483647, %v170
    %v176 = vadd.f32 %v172, 1.0
    %v177 = vadd.f32 %v173, 1.0
    %v178 = vadd.f32 %v174, 1.0
    %v179 = vadd.f32 %v175, 1.0
    %v180 = vrcp.pop %v176
    %v181 = vmul.f32 %v176, %v180
    %v182 = vsub.f32 1.0, %v181
    %v183 = vmul.f32 %v180, %v182
    %v184 = vadd.f32 %v180, %v183
    %vm185 = vweird.f32 %v176
    %vm186 = vweird.f32 %v180
    %vm187 = vmor %vm185, %vm186
    %v188 = vsel %vm187, %v180, %v184
    %v189 = vand.u32 2147483647, %v176
    %vm190 = vcmp.eq.f32.partialorder %v189, 8.507059e+37
    %v191 = vand.u32 %v176, 2147483648
    %v192 = vor.u32 1.1754944e-38, %v191
    %v193 = vsel %vm190, %v192, %v188
    %v194 = vmul.f32 %v161, %v193
    %v195 = vrcp.pop %v177
    %v196 = vmul.f32 %v177, %v195
    %v197 = vsub.f32 1.0, %v196
    %v198 = vmul.f32 %v195, %v197
    %v199 = vadd.f32 %v195, %v198
    %vm200 = vweird.f32 %v177
    %vm201 = vweird.f32 %v195
    %vm202 = vmor %vm200, %vm201
    %v203 = vsel %vm202, %v195, %v199
    %v204 = vand.u32 2147483647, %v177
    %vm205 = vcmp.eq.f32.partialorder %v204, 8.507059e+37
    %v206 = vand.u32 %v177, 2147483648
    %v207 = vor.u32 1.1754944e-38, %v206
    %v208 = vsel %vm205, %v207, %v203
    %v209 = vmul.f32 %v164, %v208
    %v210 = vrcp.pop %v178
    %v211 = vmul.f32 %v178, %v210
    %v212 = vsub.f32 1.0, %v211
    %v213 = vmul.f32 %v210, %v212
    %v214 = vadd.f32 %v210, %v213
    %vm215 = vweird.f32 %v178
    %vm216 = vweird.f32 %v210
    %vm217 = vmor %vm215, %vm216
    %v218 = vsel %vm217, %v210, %v214
    %v219 = vand.u32 2147483647, %v178
    %vm220 = vcmp.eq.f32.partialorder %v219, 8.507059e+37
    %v221 = vand.u32 %v178, 2147483648
    %v222 = vor.u32 1.1754944e-38, %v221
    %v223 = vsel %vm220, %v222, %v218
    %v224 = vmul.f32 %v167, %v223
    %v225 = vrcp.pop %v179
    %v226 = vmul.f32 %v179, %v225
    %v227 = vsub.f32 1.0, %v226
    %v228 = vmul.f32 %v225, %v227
    %v229 = vadd.f32 %v225, %v228
    %vm230 = vweird.f32 %v179
    %vm231 = vweird.f32 %v225
    %vm232 = vmor %vm230, %vm231
    %v233 = vsel %vm232, %v225, %v229
    %v234 = vand.u32 2147483647, %v179
    %vm235 = vcmp.eq.f32.partialorder %v234, 8.507059e+37
    %v236 = vand.u32 %v179, 2147483648
    %v237 = vor.u32 1.1754944e-38, %v236
    %v238 = vsel %vm235, %v237, %v233
    %v239 = vmul.f32 %v170, %v238
    %240 = vst.msk [vmem:[#allocation2] sm:$0xff] %vm130, %v194
    %241 = vst.msk [vmem:[#allocation2 + $0x8] sm:$0xff] %vm130, %v209
    %242 = vst.msk [vmem:[#allocation2 + $0x10] sm:$0xff] %vm130, %v224
    %243 = vst.msk [vmem:[#allocation2 + $0x18] sm:$0xff] %vm130, %v239
    %s244 = scalar_lea.vmem %s2, 16
    %v245 = vld [vmem:[%s244] sm:$0xff]
    %v246 = vld [vmem:[%s244 + $0x8] sm:$0xff]
    %s247 = scalar_lea.vmem %s3, 1
    %v248 = vld [vmem:[%s247] sm:$0x1]
    %v250 = vperm.slane %v248, 0
    %v253 = vsel %vm130, %v113, 0
    %v256 = vsel %vm130, %v116, 0
    %v259 = vsel %vm130, %v119, 0
    %v262 = vsel %vm130, %v122, 0
    %264 = vmatpush.msra.mxu0 0.0
    %265 = vmatpush.msra.mxu0 0.0
    %266 = vmatpush.msra.mxu0 0.0
    %267 = vmatpush.msra.mxu0 0.0
    %268 = vmatpush.msra.mxu0 0.0
    %269 = vmatpush.msra.mxu0 0.0
    %270 = vmatpush.msra.mxu0 0.0
    %271 = vmatpush.msra.mxu0 0.0
    %272 = vmatpush.msra.mxu0 0.0
    %273 = vmatpush.msra.mxu0 0.0
    %274 = vmatpush.msra.mxu0 0.0
    %275 = vmatpush.msra.mxu0 0.0
    %276 = vmatpush.msra.mxu0 0.0
    %277 = vmatpush.msra.mxu0 0.0
    %278 = vmatpush.msra.mxu0 %v246
    %279 = vmatpush.msra.mxu0 %v245
    %280 = vmatmul.f32.gmra.mxu0 %v253
    %v281 = vpop.f32.mrf.mxu0
    %v282 = vadd.f32 %v250, %v281
    %283 = vmatmul.f32.gmra.mxu0 %v256
    %v284 = vpop.f32.mrf.mxu0
    %v285 = vadd.f32 %v250, %v284
    %286 = vmatmul.f32.gmra.mxu0 %v259
    %v287 = vpop.f32.mrf.mxu0
    %v288 = vadd.f32 %v250, %v287
    %289 = vmatmul.f32.gmra.mxu0 %v262
    %v290 = vpop.f32.mrf.mxu0
    %v291 = vadd.f32 %v250, %v290
    %292 = vdwg.mxu0
    %v293 = vand.u32 2147483647, %v282
    %v294 = vand.u32 2147483647, %v285
    %v295 = vand.u32 2147483647, %v288
    %v296 = vand.u32 2147483647, %v291
    %v297 = vadd.f32 %v293, 1.0
    %v298 = vadd.f32 %v294, 1.0
    %v299 = vadd.f32 %v295, 1.0
    %v300 = vadd.f32 %v296, 1.0
    %v301 = vrcp.pop %v297
    %v302 = vmul.f32 %v297, %v301
    %v303 = vsub.f32 1.0, %v302
    %v304 = vmul.f32 %v301, %v303
    %v305 = vadd.f32 %v301, %v304
    %vm306 = vweird.f32 %v297
    %vm307 = vweird.f32 %v301
    %vm308 = vmor %vm306, %vm307
    %v309 = vsel %vm308, %v301, %v305
    %v310 = vand.u32 2147483647, %v297
    %vm311 = vcmp.eq.f32.partialorder %v310, 8.507059e+37
    %v312 = vand.u32 %v297, 2147483648
    %v313 = vor.u32 1.1754944e-38, %v312
    %v314 = vsel %vm311, %v313, %v309
    %v315 = vmul.f32 %v282, %v314
    %v316 = vrcp.pop %v298
    %v317 = vmul.f32 %v298, %v316
    %v318 = vsub.f32 1.0, %v317
    %v319 = vmul.f32 %v316, %v318
    %v320 = vadd.f32 %v316, %v319
    %vm321 = vweird.f32 %v298
    %vm322 = vweird.f32 %v316
    %vm323 = vmor %vm321, %vm322
    %v324 = vsel %vm323, %v316, %v320
    %v325 = vand.u32 2147483647, %v298
    %vm326 = vcmp.eq.f32.partialorder %v325, 8.507059e+37
    %v327 = vand.u32 %v298, 2147483648
    %v328 = vor.u32 1.1754944e-38, %v327
    %v329 = vsel %vm326, %v328, %v324
    %v330 = vmul.f32 %v285, %v329
    %v331 = vrcp.pop %v299
    %v332 = vmul.f32 %v299, %v331
    %v333 = vsub.f32 1.0, %v332
    %v334 = vmul.f32 %v331, %v333
    %v335 = vadd.f32 %v331, %v334
    %vm336 = vweird.f32 %v299
    %vm337 = vweird.f32 %v331
    %vm338 = vmor %vm336, %vm337
    %v339 = vsel %vm338, %v331, %v335
    %v340 = vand.u32 2147483647, %v299
    %vm341 = vcmp.eq.f32.partialorder %v340, 8.507059e+37
    %v342 = vand.u32 %v299, 2147483648
    %v343 = vor.u32 1.1754944e-38, %v342
    %v344 = vsel %vm341, %v343, %v339
    %v345 = vmul.f32 %v288, %v344
    %v346 = vrcp.pop %v300
    %v347 = vmul.f32 %v300, %v346
    %v348 = vsub.f32 1.0, %v347
    %v349 = vmul.f32 %v346, %v348
    %v350 = vadd.f32 %v346, %v349
    %vm351 = vweird.f32 %v300
    %vm352 = vweird.f32 %v346
    %vm353 = vmor %vm351, %vm352
    %v354 = vsel %vm353, %v346, %v350
    %v355 = vand.u32 2147483647, %v300
    %vm356 = vcmp.eq.f32.partialorder %v355, 8.507059e+37
    %v357 = vand.u32 %v300, 2147483648
    %v358 = vor.u32 1.1754944e-38, %v357
    %v359 = vsel %vm356, %v358, %v354
    %v360 = vmul.f32 %v291, %v359
    %361 = vst.msk [vmem:[#allocation2 + $0x20] sm:$0xff] %vm130, %v315
    %362 = vst.msk [vmem:[#allocation2 + $0x28] sm:$0xff] %vm130, %v330
    %363 = vst.msk [vmem:[#allocation2 + $0x30] sm:$0xff] %vm130, %v345
    %364 = vst.msk [vmem:[#allocation2 + $0x38] sm:$0xff] %vm130, %v360
    %v365 = vld [vmem:[#allocation2] ss:$4 sm:$0x1f]
    %vm366 = vcmask 126976
    %367 = vst.msk [vmem:[#allocation3] sm:$0x1f] %vm366, %v365
    %s368 = scalar_lea.vmem [#allocation2], 1
    %v369 = vld [vmem:[%s368] ss:$4 sm:$0x1f]
    %371 = vrot.lane.b32.xlu0 %v369, 16
    %v372 = vpop.permute.xlu0 %371
    %vm374 = vcmask 258176
    %375 = vst.msk [vmem:[#allocation3] sm:$0x1f] %vm374, %v372
    %s376 = scalar_lea.vmem [#allocation2], 2
    %v377 = vld [vmem:[%s376] ss:$4 sm:$0x1f]
    %379 = vrot.lane.b32.xlu0 %v377, 32
    %v380 = vpop.permute.xlu0 %379
    %vm382 = vcmask 389376
    %383 = vst.msk [vmem:[#allocation3] sm:$0x1f] %vm382, %v380
    %s384 = scalar_lea.vmem [#allocation2], 3
    %v385 = vld [vmem:[%s384] ss:$4 sm:$0x1f]
    %387 = vrot.lane.b32.xlu0 %v385, 48
    %v388 = vpop.permute.xlu0 %387
    %vm390 = vcmask 520576
    %391 = vst.msk [vmem:[#allocation3] sm:$0x1f] %vm390, %v388
    %s392 = scalar_lea.vmem [#allocation2], 4
    %v393 = vld [vmem:[%s392] ss:$4 sm:$0x1f]
    %395 = vrot.lane.b32.xlu0 %v393, 64
    %v396 = vpop.permute.xlu0 %395
    %vm398 = vcmask 651776
    %399 = vst.msk [vmem:[#allocation3] sm:$0x1f] %vm398, %v396
    %s400 = scalar_lea.vmem [#allocation2], 5
    %v401 = vld [vmem:[%s400] ss:$4 sm:$0x1f]
    %403 = vrot.lane.b32.xlu0 %v401, 80
    %v404 = vpop.permute.xlu0 %403
    %vm406 = vcmask 782976
    %407 = vst.msk [vmem:[#allocation3] sm:$0x1f] %vm406, %v404
    %s408 = scalar_lea.vmem [#allocation2], 6
    %v409 = vld [vmem:[%s408] ss:$4 sm:$0x1f]
    %411 = vrot.lane.b32.xlu0 %v409, 96
    %v412 = vpop.permute.xlu0 %411
    %vm414 = vcmask 914176
    %415 = vst.msk [vmem:[#allocation3] sm:$0x1f] %vm414, %v412
    %s416 = scalar_lea.vmem [#allocation2], 7
    %v417 = vld [vmem:[%s416] ss:$4 sm:$0x1f]
    %419 = vrot.lane.b32.xlu0 %v417, 112
    %v420 = vpop.permute.xlu0 %419
    %vm422 = vcmask 1045376
    %423 = vst.msk [vmem:[#allocation3] sm:$0x1f] %vm422, %v420
    %s424 = scalar_lea.vmem [#allocation2], 8
    %v425 = vld [vmem:[%s424] ss:$4 sm:$0x1f]
    %426 = vst.msk [vmem:[#allocation3 + $0x8] sm:$0x1f] %vm366, %v425
    %s427 = scalar_lea.vmem [#allocation2], 9
    %v428 = vld [vmem:[%s427] ss:$4 sm:$0x1f]
    %430 = vrot.lane.b32.xlu0 %v428, 16
    %v431 = vpop.permute.xlu0 %430
    %433 = vst.msk [vmem:[#allocation3 + $0x8] sm:$0x1f] %vm374, %v431
    %s434 = scalar_lea.vmem [#allocation2], 10
    %v435 = vld [vmem:[%s434] ss:$4 sm:$0x1f]
    %437 = vrot.lane.b32.xlu0 %v435, 32
    %v438 = vpop.permute.xlu0 %437
    %440 = vst.msk [vmem:[#allocation3 + $0x8] sm:$0x1f] %vm382, %v438
    %s441 = scalar_lea.vmem [#allocation2], 11
    %v442 = vld [vmem:[%s441] ss:$4 sm:$0x1f]
    %444 = vrot.lane.b32.xlu0 %v442, 48
    %v445 = vpop.permute.xlu0 %444
    %447 = vst.msk [vmem:[#allocation3 + $0x8] sm:$0x1f] %vm390, %v445
    %s448 = scalar_lea.vmem [#allocation2], 12
    %v449 = vld [vmem:[%s448] ss:$4 sm:$0x1f]
    %451 = vrot.lane.b32.xlu0 %v449, 64
    %v452 = vpop.permute.xlu0 %451
    %454 = vst.msk [vmem:[#allocation3 + $0x8] sm:$0x1f] %vm398, %v452
    %s455 = scalar_lea.vmem [#allocation2], 13
    %v456 = vld [vmem:[%s455] ss:$4 sm:$0x1f]
    %458 = vrot.lane.b32.xlu0 %v456, 80
    %v459 = vpop.permute.xlu0 %458
    %461 = vst.msk [vmem:[#allocation3 + $0x8] sm:$0x1f] %vm406, %v459
    %s462 = scalar_lea.vmem [#allocation2], 32
    %v463 = vld [vmem:[%s462] ss:$4 sm:$0x1f]
    %v465 = vrot.slane %v463, 3
    %vm467 = vcmask 130053
    %468 = vst.msk [vmem:[#allocation3] sm:$0xe0] %vm467, %v465
    %vm469 = vcmask 123904
    %470 = vst.msk [vmem:[#allocation3 + $0x10] sm:$0x3] %vm469, %v465
    %s471 = scalar_lea.vmem [#allocation2], 33
    %v472 = vld [vmem:[%s471] ss:$4 sm:$0x1f]
    %v474 = vrot.slane %v472, 3
    %475 = vrot.lane.b32.xlu0 %v474, 16
    %v476 = vpop.permute.xlu0 %475
    %vm478 = vcmask 261253
    %479 = vst.msk [vmem:[#allocation3] sm:$0xe0] %vm478, %v476
    %vm480 = vcmask 255104
    %481 = vst.msk [vmem:[#allocation3 + $0x10] sm:$0x3] %vm480, %v476
    %s482 = scalar_lea.vmem [#allocation2], 34
    %v483 = vld [vmem:[%s482] ss:$4 sm:$0x1f]
    %v485 = vrot.slane %v483, 3
    %486 = vrot.lane.b32.xlu0 %v485, 32
    %v487 = vpop.permute.xlu0 %486
    %vm489 = vcmask 392453
    %490 = vst.msk [vmem:[#allocation3] sm:$0xe0] %vm489, %v487
    %vm491 = vcmask 386304
    %492 = vst.msk [vmem:[#allocation3 + $0x10] sm:$0x3] %vm491, %v487
    %s493 = scalar_lea.vmem [#allocation2], 35
    %v494 = vld [vmem:[%s493] ss:$4 sm:$0x1f]
    %v496 = vrot.slane %v494, 3
    %497 = vrot.lane.b32.xlu0 %v496, 48
    %v498 = vpop.permute.xlu0 %497
    %vm500 = vcmask 523653
    %501 = vst.msk [vmem:[#allocation3] sm:$0xe0] %vm500, %v498
    %vm502 = vcmask 517504
    %503 = vst.msk [vmem:[#allocation3 + $0x10] sm:$0x3] %vm502, %v498
    %s504 = scalar_lea.vmem [#allocation2], 36
    %v505 = vld [vmem:[%s504] ss:$4 sm:$0x1f]
    %v507 = vrot.slane %v505, 3
    %508 = vrot.lane.b32.xlu0 %v507, 64
    %v509 = vpop.permute.xlu0 %508
    %vm511 = vcmask 654853
    %512 = vst.msk [vmem:[#allocation3] sm:$0xe0] %vm511, %v509
    %vm513 = vcmask 648704
    %514 = vst.msk [vmem:[#allocation3 + $0x10] sm:$0x3] %vm513, %v509
    %s515 = scalar_lea.vmem [#allocation2], 37
    %v516 = vld [vmem:[%s515] ss:$4 sm:$0x1f]
    %v518 = vrot.slane %v516, 3
    %519 = vrot.lane.b32.xlu0 %v518, 80
    %v520 = vpop.permute.xlu0 %519
    %vm522 = vcmask 786053
    %523 = vst.msk [vmem:[#allocation3] sm:$0xe0] %vm522, %v520
    %vm524 = vcmask 779904
    %525 = vst.msk [vmem:[#allocation3 + $0x10] sm:$0x3] %vm524, %v520
    %s526 = scalar_lea.vmem [#allocation2], 38
    %v527 = vld [vmem:[%s526] ss:$4 sm:$0x1f]
    %v529 = vrot.slane %v527, 3
    %530 = vrot.lane.b32.xlu0 %v529, 96
    %v531 = vpop.permute.xlu0 %530
    %vm533 = vcmask 917253
    %534 = vst.msk [vmem:[#allocation3] sm:$0xe0] %vm533, %v531
    %vm535 = vcmask 911104
    %536 = vst.msk [vmem:[#allocation3 + $0x10] sm:$0x3] %vm535, %v531
    %s537 = scalar_lea.vmem [#allocation2], 39
    %v538 = vld [vmem:[%s537] ss:$4 sm:$0x1f]
    %v540 = vrot.slane %v538, 3
    %541 = vrot.lane.b32.xlu0 %v540, 112
    %v542 = vpop.permute.xlu0 %541
    %vm544 = vcmask 1048453
    %545 = vst.msk [vmem:[#allocation3] sm:$0xe0] %vm544, %v542
    %vm546 = vcmask 1042304
    %547 = vst.msk [vmem:[#allocation3 + $0x10] sm:$0x3] %vm546, %v542
    %s548 = scalar_lea.vmem [#allocation2], 40
    %v549 = vld [vmem:[%s548] ss:$4 sm:$0x1f]
    %v551 = vrot.slane %v549, 3
    %553 = vst.msk [vmem:[#allocation3 + $0x8] sm:$0xe0] %vm467, %v551
    %554 = vst.msk [vmem:[#allocation3 + $0x18] sm:$0x3] %vm469, %v551
    %s555 = scalar_lea.vmem [#allocation2], 41
    %v556 = vld [vmem:[%s555] ss:$4 sm:$0x1f]
    %v558 = vrot.slane %v556, 3
    %559 = vrot.lane.b32.xlu0 %v558, 16
    %v560 = vpop.permute.xlu0 %559
    %562 = vst.msk [vmem:[#allocation3 + $0x8] sm:$0xe0] %vm478, %v560
    %563 = vst.msk [vmem:[#allocation3 + $0x18] sm:$0x3] %vm480, %v560
    %s564 = scalar_lea.vmem [#allocation2], 42
    %v565 = vld [vmem:[%s564] ss:$4 sm:$0x1f]
    %v567 = vrot.slane %v565, 3
    %568 = vrot.lane.b32.xlu0 %v567, 32
    %v569 = vpop.permute.xlu0 %568
    %571 = vst.msk [vmem:[#allocation3 + $0x8] sm:$0xe0] %vm489, %v569
    %572 = vst.msk [vmem:[#allocation3 + $0x18] sm:$0x3] %vm491, %v569
    %s573 = scalar_lea.vmem [#allocation2], 43
    %v574 = vld [vmem:[%s573] ss:$4 sm:$0x1f]
    %v576 = vrot.slane %v574, 3
    %577 = vrot.lane.b32.xlu0 %v576, 48
    %v578 = vpop.permute.xlu0 %577
    %580 = vst.msk [vmem:[#allocation3 + $0x8] sm:$0xe0] %vm500, %v578
    %581 = vst.msk [vmem:[#allocation3 + $0x18] sm:$0x3] %vm502, %v578
    %s582 = scalar_lea.vmem [#allocation2], 44
    %v583 = vld [vmem:[%s582] ss:$4 sm:$0x1f]
    %v585 = vrot.slane %v583, 3
    %586 = vrot.lane.b32.xlu0 %v585, 64
    %v587 = vpop.permute.xlu0 %586
    %589 = vst.msk [vmem:[#allocation3 + $0x8] sm:$0xe0] %vm511, %v587
    %590 = vst.msk [vmem:[#allocation3 + $0x18] sm:$0x3] %vm513, %v587
    %s591 = scalar_lea.vmem [#allocation2], 45
    %v592 = vld [vmem:[%s591] ss:$4 sm:$0x1f]
    %v594 = vrot.slane %v592, 3
    %595 = vrot.lane.b32.xlu0 %v594, 80
    %v596 = vpop.permute.xlu0 %595
    %598 = vst.msk [vmem:[#allocation3 + $0x8] sm:$0xe0] %vm522, %v596
    %599 = vst.msk [vmem:[#allocation3 + $0x18] sm:$0x3] %vm524, %v596
    %v600 = vld [vmem:[#allocation6] sm:$0xff]
    %v601 = vld [vmem:[#allocation6 + $0x8] sm:$0xff]
    %v602 = vld [vmem:[#allocation6 + $0x10] sm:$0xff]
    %v603 = vld [vmem:[#allocation6 + $0x18] sm:$0xff]
    %v604 = vld [vmem:[#allocation6 + $0x20] sm:$0xff]
    %v605 = vld [vmem:[#allocation6 + $0x28] sm:$0xff]
    %v606 = vld [vmem:[#allocation6 + $0x30] sm:$0xff]
    %v607 = vld [vmem:[#allocation6 + $0x38] sm:$0xff]
    %v608 = vld [vmem:[#allocation6 + $0x40] sm:$0xff]
    %v609 = vld [vmem:[#allocation6 + $0x48] sm:$0xff]
    %v610 = vld [vmem:[#allocation6 + $0x50] sm:$0xff]
    %v611 = vld [vmem:[#allocation6 + $0x58] sm:$0xff]
    %v612 = vld [vmem:[#allocation6 + $0x60] sm:$0xff]
    %v613 = vld [vmem:[#allocation6 + $0x68] sm:$0xff]
    %v614 = vld [vmem:[#allocation6 + $0x70] sm:$0xff]
    %v615 = vld [vmem:[#allocation6 + $0x78] sm:$0xff]
    %v616 = vld [vmem:[#allocation6 + $0x80] sm:$0xff]
    %v617 = vld [vmem:[#allocation6 + $0x88] sm:$0xff]
    %v618 = vld [vmem:[#allocation6 + $0x90] sm:$0xff]
    %v619 = vld [vmem:[#allocation6 + $0x98] sm:$0xff]
    %v620 = vld [vmem:[#allocation6 + $0xa0] sm:$0xff]
    %v621 = vld [vmem:[#allocation6 + $0xa8] sm:$0xff]
    %v622 = vld [vmem:[#allocation6 + $0xb0] sm:$0xff]
    %v623 = vld [vmem:[#allocation6 + $0xb8] sm:$0xff]
    %v624 = vld [vmem:[#allocation6 + $0xc0] sm:$0xff]
    %v625 = vld [vmem:[#allocation6 + $0xc8] sm:$0xff]
    %v626 = vld [vmem:[#allocation6 + $0xd0] sm:$0xff]
    %v627 = vld [vmem:[#allocation6 + $0xd8] sm:$0xff]
    %v628 = vld [vmem:[#allocation6 + $0xe0] sm:$0x1]
    %v629 = vld [vmem:[#allocation3] sm:$0xff]
    %v630 = vld [vmem:[#allocation3 + $0x8] sm:$0xff]
    %v631 = vld [vmem:[#allocation3 + $0x10] sm:$0x3]
    %v632 = vld [vmem:[#allocation3 + $0x18] sm:$0x3]
    %v633 = vperm.slane %v628, 0
    %vm634 = vcmask 785408
    %v636 = vsel %vm634, %v630, 0
    %v639 = vsel %vm634, %v632, 0
    %641 = vmatpush.msra.mxu0 %v615
    %642 = vmatpush.msra.mxu0 %v614
    %643 = vmatpush.msra.mxu0 %v613
    %644 = vmatpush.msra.mxu0 %v612
    %645 = vmatpush.msra.mxu0 %v611
    %646 = vmatpush.msra.mxu0 %v610
    %647 = vmatpush.msra.mxu0 %v609
    %648 = vmatpush.msra.mxu0 %v608
    %649 = vmatpush.msra.mxu0 %v607
    %650 = vmatpush.msra.mxu0 %v606
    %651 = vmatpush.msra.mxu0 %v605
    %652 = vmatpush.msra.mxu0 %v604
    %653 = vmatpush.msra.mxu0 %v603
    %654 = vmatpush.msra.mxu0 %v602
    %655 = vmatpush.msra.mxu0 %v601
    %656 = vmatpush.msra.mxu0 %v600
    %657 = vmatmul.f32.gmra.mxu0 %v629
    %v658 = vpop.f32.mrf.mxu0
    %v659 = vadd.f32 %v633, %v658
    %660 = vmatmul.f32.gmra.mxu0 %v631
    %v661 = vpop.f32.mrf.mxu0
    %v662 = vadd.f32 %v633, %v661
    %663 = vdwg.mxu0
    %664 = vmatpush.msra.mxu0 0.0
    %665 = vmatpush.msra.mxu0 0.0
    %666 = vmatpush.msra.mxu0 0.0
    %667 = vmatpush.msra.mxu0 0.0
    %668 = vmatpush.msra.mxu0 %v627
    %669 = vmatpush.msra.mxu0 %v626
    %670 = vmatpush.msra.mxu0 %v625
    %671 = vmatpush.msra.mxu0 %v624
    %672 = vmatpush.msra.mxu0 %v623
    %673 = vmatpush.msra.mxu0 %v622
    %674 = vmatpush.msra.mxu0 %v621
    %675 = vmatpush.msra.mxu0 %v620
    %676 = vmatpush.msra.mxu0 %v619
    %677 = vmatpush.msra.mxu0 %v618
    %678 = vmatpush.msra.mxu0 %v617
    %679 = vmatpush.msra.mxu0 %v616
    %680 = vmatmul.f32.gmra.mxu0 %v636
    %v681 = vpop.f32.mrf.mxu0
    %v682 = vadd.f32 %v659, %v681
    %683 = vmatmul.f32.gmra.mxu0 %v639
    %v684 = vpop.f32.mrf.mxu0
    %v685 = vadd.f32 %v662, %v684
    %686 = vdwg.mxu0
    %687 = vst.msk [vmem:[#allocation4] sm:$0xff] %vm634, %v682
    %vm688 = vcmask 779264
    %689 = vst.msk [vmem:[#allocation4 + $0x8] sm:$0x3] %vm688, %v685
    %v690 = vld [vmem:[#allocation6 + $0x110] sm:$0xff]
    %v691 = vld [vmem:[#allocation6 + $0x118] sm:$0xff]
    %v692 = vld [vmem:[#allocation6 + $0x120] sm:$0xff]
    %v693 = vld [vmem:[#allocation6 + $0x128] sm:$0xff]
    %v694 = vld [vmem:[#allocation6 + $0x130] sm:$0x1]
    %v695 = vld [vmem:[#allocation4] ss:$5 sm:$0x3]
    %v696 = vperm.slane %v694, 0
    %vm697 = vcmask 261120
    %v699 = vsel %vm697, 0.0, 0
    %701 = vmatpush.msra.mxu0 0.0
    %702 = vmatpush.msra.mxu0 0.0
    %703 = vmatpush.msra.mxu0 0.0
    %704 = vmatpush.msra.mxu0 0.0
    %705 = vmatpush.msra.mxu0 0.0
    %706 = vmatpush.msra.mxu0 0.0
    %707 = vmatpush.msra.mxu0 0.0
    %708 = vmatpush.msra.mxu0 0.0
    %709 = vmatpush.msra.mxu0 0.0
    %710 = vmatpush.msra.mxu0 0.0
    %711 = vmatpush.msra.mxu0 0.0
    %712 = vmatpush.msra.mxu0 0.0
    %713 = vmatpush.msra.mxu0 %v693
    %714 = vmatpush.msra.mxu0 %v692
    %715 = vmatpush.msra.mxu0 %v691
    %716 = vmatpush.msra.mxu0 %v690
    %717 = vmatmul.f32.gmra.mxu0 %v699
    %v718 = vpop.f32.mrf.mxu0
    %v719 = vadd.f32 %v696, %v718
    %720 = vdwg.mxu0
    %v721 = vadd.f32 %v695, %v719
    %v722 = vxor.u32 %v721, 2147483648
    %v723 = vmul.f32 %v722, 1.442695
    %v724 = vpow.pop %v723
    %v725 = vadd.f32 %v724, 1.0
    %v726 = vrcp.pop %v725
    %v727 = vmul.f32 %v725, %v726
    %v728 = vsub.f32 1.0, %v727
    %v729 = vmul.f32 %v726, %v728
    %v730 = vadd.f32 %v726, %v729
    %vm731 = vweird.f32 %v725
    %vm732 = vweird.f32 %v726
    %vm733 = vmor %vm731, %vm732
    %v734 = vsel %vm733, %v726, %v730
    %v735 = vand.u32 2147483647, %v725
    %vm736 = vcmp.eq.f32.partialorder %v735, 8.507059e+37
    %v737 = vand.u32 %v725, 2147483648
    %v738 = vor.u32 1.1754944e-38, %v737
    %v739 = vsel %vm736, %v738, %v734
    %v740 = vmul.f32 1.0, %v739
    %742 = vrot.lane.b32.xlu0 %v719, 64
    %v743 = vpop.permute.xlu0 %742
    %v745 = vmul.f32 %v740, %v743
    %747 = vrot.lane.b32.xlu0 %v745, 64
    %v748 = vpop.permute.xlu0 %747
    %v750 = vadd.f32 %v695, %v748
    %v751 = vtanh.pop %v750
    %v752 = vsub.f32 1.0, %v740
    %754 = vrot.lane.b32.xlu0 %v751, 96
    %v755 = vpop.permute.xlu0 %754
    %v757 = vmul.f32 %v752, %v755
    %v758 = vmul.f32 %v740, 0.0
    %v759 = vadd.f32 %v757, %v758
    %761 = vrot.lane.b32.xlu0 %v759, 96
    %v762 = vpop.permute.xlu0 %761
    %vm764 = vcmask 254976
    %765 = vst.msk [vmem:[#allocation5] sm:$0x3] %vm764, %v762
    %s766 = scalar_lea.vmem [#allocation4], 1
    %v767 = vld [vmem:[%s766] ss:$5 sm:$0x3]
    %v768 = vsel %vm697, %v762, 0
    %770 = vmatpush.msra.mxu0 0.0
    %771 = vmatpush.msra.mxu0 0.0
    %772 = vmatpush.msra.mxu0 0.0
    %773 = vmatpush.msra.mxu0 0.0
    %774 = vmatpush.msra.mxu0 0.0
    %775 = vmatpush.msra.mxu0 0.0
    %776 = vmatpush.msra.mxu0 0.0
    %777 = vmatpush.msra.mxu0 0.0
    %778 = vmatpush.msra.mxu0 0.0
    %779 = vmatpush.msra.mxu0 0.0
    %780 = vmatpush.msra.mxu0 0.0
    %781 = vmatpush.msra.mxu0 0.0
    %782 = vmatpush.msra.mxu0 %v693
    %783 = vmatpush.msra.mxu0 %v692
    %784 = vmatpush.msra.mxu0 %v691
    %785 = vmatpush.msra.mxu0 %v690
    %786 = vmatmul.f32.gmra.mxu0 %v768
    %v787 = vpop.f32.mrf.mxu0
    %v788 = vadd.f32 %v696, %v787
    %789 = vdwg.mxu0
    %v790 = vadd.f32 %v767, %v788
    %v791 = vxor.u32 %v790, 2147483648
    %v792 = vmul.f32 %v791, 1.442695
    %v793 = vpow.pop %v792
    %v794 = vadd.f32 %v793, 1.0
    %v795 = vrcp.pop %v794
    %v796 = vmul.f32 %v794, %v795
    %v797 = vsub.f32 1.0, %v796
    %v798 = vmul.f32 %v795, %v797
    %v799 = vadd.f32 %v795, %v798
    %vm800 = vweird.f32 %v794
    %vm801 = vweird.f32 %v795
    %vm802 = vmor %vm800, %vm801
    %v803 = vsel %vm802, %v795, %v799
    %v804 = vand.u32 2147483647, %v794
    %vm805 = vcmp.eq.f32.partialorder %v804, 8.507059e+37
    %v806 = vand.u32 %v794, 2147483648
    %v807 = vor.u32 1.1754944e-38, %v806
    %v808 = vsel %vm805, %v807, %v803
    %v809 = vmul.f32 1.0, %v808
    %811 = vrot.lane.b32.xlu0 %v788, 64
    %v812 = vpop.permute.xlu0 %811
    %v814 = vmul.f32 %v809, %v812
    %816 = vrot.lane.b32.xlu0 %v814, 64
    %v817 = vpop.permute.xlu0 %816
    %v819 = vadd.f32 %v767, %v817
    %v820 = vtanh.pop %v819
    %v821 = vsub.f32 1.0, %v809
    %823 = vrot.lane.b32.xlu0 %v820, 96
    %v824 = vpop.permute.xlu0 %823
    %v826 = vmul.f32 %v821, %v824
    %v827 = vmul.f32 %v809, %v759
    %v828 = vadd.f32 %v826, %v827
    %830 = vrot.lane.b32.xlu0 %v828, 96
    %v831 = vpop.permute.xlu0 %830
    %833 = vst.msk [vmem:[#allocation5 + $0x2] sm:$0x3] %vm764, %v831
    %s834 = scalar_lea.vmem [#allocation4], 2
    %v835 = vld [vmem:[%s834] ss:$5 sm:$0x3]
    %v836 = vsel %vm697, %v831, 0
    %838 = vmatpush.msra.mxu0 0.0
    %839 = vmatpush.msra.mxu0 0.0
    %840 = vmatpush.msra.mxu0 0.0
    %841 = vmatpush.msra.mxu0 0.0
    %842 = vmatpush.msra.mxu0 0.0
    %843 = vmatpush.msra.mxu0 0.0
    %844 = vmatpush.msra.mxu0 0.0
    %845 = vmatpush.msra.mxu0 0.0
    %846 = vmatpush.msra.mxu0 0.0
    %847 = vmatpush.msra.mxu0 0.0
    %848 = vmatpush.msra.mxu0 0.0
    %849 = vmatpush.msra.mxu0 0.0
    %850 = vmatpush.msra.mxu0 %v693
    %851 = vmatpush.msra.mxu0 %v692
    %852 = vmatpush.msra.mxu0 %v691
    %853 = vmatpush.msra.mxu0 %v690
    %854 = vmatmul.f32.gmra.mxu0 %v836
    %v855 = vpop.f32.mrf.mxu0
    %v856 = vadd.f32 %v696, %v855
    %857 = vdwg.mxu0
    %v858 = vadd.f32 %v835, %v856
    %v859 = vxor.u32 %v858, 2147483648
    %v860 = vmul.f32 %v859, 1.442695
    %v861 = vpow.pop %v860
    %v862 = vadd.f32 %v861, 1.0
    %v863 = vrcp.pop %v862
    %v864 = vmul.f32 %v862, %v863
    %v865 = vsub.f32 1.0, %v864
    %v866 = vmul.f32 %v863, %v865
    %v867 = vadd.f32 %v863, %v866
    %vm868 = vweird.f32 %v862
    %vm869 = vweird.f32 %v863
    %vm870 = vmor %vm868, %vm869
    %v871 = vsel %vm870, %v863, %v867
    %v872 = vand.u32 2147483647, %v862
    %vm873 = vcmp.eq.f32.partialorder %v872, 8.507059e+37
    %v874 = vand.u32 %v862, 2147483648
    %v875 = vor.u32 1.1754944e-38, %v874
    %v876 = vsel %vm873, %v875, %v871
    %v877 = vmul.f32 1.0, %v876
    %879 = vrot.lane.b32.xlu0 %v856, 64
    %v880 = vpop.permute.xlu0 %879
    %v882 = vmul.f32 %v877, %v880
    %884 = vrot.lane.b32.xlu0 %v882, 64
    %v885 = vpop.permute.xlu0 %884
    %v887 = vadd.f32 %v835, %v885
    %v888 = vtanh.pop %v887
    %v889 = vsub.f32 1.0, %v877
    %891 = vrot.lane.b32.xlu0 %v888, 96
    %v892 = vpop.permute.xlu0 %891
    %v894 = vmul.f32 %v889, %v892
    %v895 = vmul.f32 %v877, %v828
    %v896 = vadd.f32 %v894, %v895
    %898 = vrot.lane.b32.xlu0 %v896, 96
    %v899 = vpop.permute.xlu0 %898
    %901 = vst.msk [vmem:[#allocation5 + $0x4] sm:$0x3] %vm764, %v899
    %s902 = scalar_lea.vmem [#allocation4], 3
    %v903 = vld [vmem:[%s902] ss:$5 sm:$0x3]
    %v904 = vsel %vm697, %v899, 0
    %906 = vmatpush.msra.mxu0 0.0
    %907 = vmatpush.msra.mxu0 0.0
    %908 = vmatpush.msra.mxu0 0.0
    %909 = vmatpush.msra.mxu0 0.0
    %910 = vmatpush.msra.mxu0 0.0
    %911 = vmatpush.msra.mxu0 0.0
    %912 = vmatpush.msra.mxu0 0.0
    %913 = vmatpush.msra.mxu0 0.0
    %914 = vmatpush.msra.mxu0 0.0
    %915 = vmatpush.msra.mxu0 0.0
    %916 = vmatpush.msra.mxu0 0.0
    %917 = vmatpush.msra.mxu0 0.0
    %918 = vmatpush.msra.mxu0 %v693
    %919 = vmatpush.msra.mxu0 %v692
    %920 = vmatpush.msra.mxu0 %v691
    %921 = vmatpush.msra.mxu0 %v690
    %922 = vmatmul.f32.gmra.mxu0 %v904
    %v923 = vpop.f32.mrf.mxu0
    %v924 = vadd.f32 %v696, %v923
    %925 = vdwg.mxu0
    %v926 = vadd.f32 %v903, %v924
    %v927 = vxor.u32 %v926, 2147483648
    %v928 = vmul.f32 %v927, 1.442695
    %v929 = vpow.pop %v928
    %v930 = vadd.f32 %v929, 1.0
    %v931 = vrcp.pop %v930
    %v932 = vmul.f32 %v930, %v931
    %v933 = vsub.f32 1.0, %v932
    %v934 = vmul.f32 %v931, %v933
    %v935 = vadd.f32 %v931, %v934
    %vm936 = vweird.f32 %v930
    %vm937 = vweird.f32 %v931
    %vm938 = vmor %vm936, %vm937
    %v939 = vsel %vm938, %v931, %v935
    %v940 = vand.u32 2147483647, %v930
    %vm941 = vcmp.eq.f32.partialorder %v940, 8.507059e+37
    %v942 = vand.u32 %v930, 2147483648
    %v943 = vor.u32 1.1754944e-38, %v942
    %v944 = vsel %vm941, %v943, %v939
    %v945 = vmul.f32 1.0, %v944
    %947 = vrot.lane.b32.xlu0 %v924, 64
    %v948 = vpop.permute.xlu0 %947
    %v950 = vmul.f32 %v945, %v948
    %952 = vrot.lane.b32.xlu0 %v950, 64
    %v953 = vpop.permute.xlu0 %952
    %v955 = vadd.f32 %v903, %v953
    %v956 = vtanh.pop %v955
    %v957 = vsub.f32 1.0, %v945
    %959 = vrot.lane.b32.xlu0 %v956, 96
    %v960 = vpop.permute.xlu0 %959
    %v962 = vmul.f32 %v957, %v960
    %v963 = vmul.f32 %v945, %v896
    %v964 = vadd.f32 %v962, %v963
    %966 = vrot.lane.b32.xlu0 %v964, 96
    %v967 = vpop.permute.xlu0 %966
    %969 = vst.msk [vmem:[#allocation5 + $0x6] sm:$0x3] %vm764, %v967
    %s970 = scalar_lea.vmem [#allocation4], 4
    %v971 = vld [vmem:[%s970] ss:$5 sm:$0x3]
    %v972 = vsel %vm697, %v967, 0
    %974 = vmatpush.msra.mxu0 0.0
    %975 = vmatpush.msra.mxu0 0.0
    %976 = vmatpush.msra.mxu0 0.0
    %977 = vmatpush.msra.mxu0 0.0
    %978 = vmatpush.msra.mxu0 0.0
    %979 = vmatpush.msra.mxu0 0.0
    %980 = vmatpush.msra.mxu0 0.0
    %981 = vmatpush.msra.mxu0 0.0
    %982 = vmatpush.msra.mxu0 0.0
    %983 = vmatpush.msra.mxu0 0.0
    %984 = vmatpush.msra.mxu0 0.0
    %985 = vmatpush.msra.mxu0 0.0
    %986 = vmatpush.msra.mxu0 %v693
    %987 = vmatpush.msra.mxu0 %v692
    %988 = vmatpush.msra.mxu0 %v691
    %989 = vmatpush.msra.mxu0 %v690
    %990 = vmatmul.f32.gmra.mxu0 %v972
    %v991 = vpop.f32.mrf.mxu0
    %v992 = vadd.f32 %v696, %v991
    %993 = vdwg.mxu0
    %v994 = vadd.f32 %v971, %v992
    %v995 = vxor.u32 %v994, 2147483648
    %v996 = vmul.f32 %v995, 1.442695
    %v997 = vpow.pop %v996
    %v998 = vadd.f32 %v997, 1.0
    %v999 = vrcp.pop %v998
    %v1000 = vmul.f32 %v998, %v999
    %v1001 = vsub.f32 1.0, %v1000
    %v1002 = vmul.f32 %v999, %v1001
    %v1003 = vadd.f32 %v999, %v1002
    %vm1004 = vweird.f32 %v998
    %vm1005 = vweird.f32 %v999
    %vm1006 = vmor %vm1004, %vm1005
    %v1007 = vsel %vm1006, %v999, %v1003
    %v1008 = vand.u32 2147483647, %v998
    %vm1009 = vcmp.eq.f32.partialorder %v1008, 8.507059e+37
    %v1010 = vand.u32 %v998, 2147483648
    %v1011 = vor.u32 1.1754944e-38, %v1010
    %v1012 = vsel %vm1009, %v1011, %v1007
    %v1013 = vmul.f32 1.0, %v1012
    %1015 = vrot.lane.b32.xlu0 %v992, 64
    %v1016 = vpop.permute.xlu0 %1015
    %v1018 = vmul.f32 %v1013, %v1016
    %1020 = vrot.lane.b32.xlu0 %v1018, 64
    %v1021 = vpop.permute.xlu0 %1020
    %v1023 = vadd.f32 %v971, %v1021
    %v1024 = vtanh.pop %v1023
    %v1025 = vsub.f32 1.0, %v1013
    %1027 = vrot.lane.b32.xlu0 %v1024, 96
    %v1028 = vpop.permute.xlu0 %1027
    %v1030 = vmul.f32 %v1025, %v1028
    %v1031 = vmul.f32 %v1013, %v964
    %v1032 = vadd.f32 %v1030, %v1031
    %1034 = vrot.lane.b32.xlu0 %v1032, 96
    %v1035 = vpop.permute.xlu0 %1034
    %1037 = vst.msk [vmem:[#allocation5 + $0x8] sm:$0x3] %vm764, %v1035
    %v1038 = vld [vmem:[#allocation6 + $0x138] sm:$0xff]
    %v1039 = vld [vmem:[#allocation6 + $0x140] sm:$0xff]
    %v1040 = vld [vmem:[#allocation6 + $0x148] sm:$0xff]
    %v1041 = vld [vmem:[#allocation6 + $0x150] sm:$0xff]
    %v1042 = vld [vmem:[#allocation6 + $0x158] sm:$0x1]
    %v1043 = vld [vmem:[#allocation6 + $0xe8] sm:$0xff]
    %v1044 = vld [vmem:[#allocation6 + $0xf0] sm:$0xff]
    %v1045 = vld [vmem:[#allocation6 + $0xf8] sm:$0xff]
    %v1046 = vld [vmem:[#allocation6 + $0x100] sm:$0xff]
    %v1047 = vld [vmem:[#allocation6 + $0x108] sm:$0x1]
    %v1048 = vld [vmem:[#allocation5] sm:$0xff]
    %v1049 = vld [vmem:[#allocation5 + $0x8] sm:$0x3]
    %v1050 = vperm.slane %v1047, 0
    %v1052 = vsel %vm697, %v1048, 0
    %v1055 = vsel %vm697, %v1049, 0
    %1057 = vmatpush.msra.mxu0 0.0
    %1058 = vmatpush.msra.mxu0 0.0
    %1059 = vmatpush.msra.mxu0 0.0
    %1060 = vmatpush.msra.mxu0 0.0
    %1061 = vmatpush.msra.mxu0 0.0
    %1062 = vmatpush.msra.mxu0 0.0
    %1063 = vmatpush.msra.mxu0 0.0
    %1064 = vmatpush.msra.mxu0 0.0
    %1065 = vmatpush.msra.mxu0 0.0
    %1066 = vmatpush.msra.mxu0 0.0
    %1067 = vmatpush.msra.mxu0 0.0
    %1068 = vmatpush.msra.mxu0 0.0
    %1069 = vmatpush.msra.mxu0 %v1046
    %1070 = vmatpush.msra.mxu0 %v1045
    %1071 = vmatpush.msra.mxu0 %v1044
    %1072 = vmatpush.msra.mxu0 %v1043
    %1073 = vmatmul.f32.gmra.mxu0 %v1052
    %v1074 = vpop.f32.mrf.mxu0
    %v1075 = vadd.f32 %v1050, %v1074
    %1076 = vmatmul.f32.gmra.mxu0 %v1055
    %v1077 = vpop.f32.mrf.mxu0
    %v1078 = vadd.f32 %v1050, %v1077
    %1079 = vdwg.mxu0
    %1080 = vst.msk [vmem:[#allocation4] sm:$0xff] %vm634, %v1075
    %1081 = vst.msk [vmem:[#allocation4 + $0x8] sm:$0x3] %vm688, %v1078
    %v1082 = vld [vmem:[#allocation4] sm:$0x3]
    %v1083 = vperm.slane %v1042, 0
    %1084 = vmatpush.msra.mxu0 0.0
    %1085 = vmatpush.msra.mxu0 0.0
    %1086 = vmatpush.msra.mxu0 0.0
    %1087 = vmatpush.msra.mxu0 0.0
    %1088 = vmatpush.msra.mxu0 0.0
    %1089 = vmatpush.msra.mxu0 0.0
    %1090 = vmatpush.msra.mxu0 0.0
    %1091 = vmatpush.msra.mxu0 0.0
    %1092 = vmatpush.msra.mxu0 0.0
    %1093 = vmatpush.msra.mxu0 0.0
    %1094 = vmatpush.msra.mxu0 0.0
    %1095 = vmatpush.msra.mxu0 0.0
    %1096 = vmatpush.msra.mxu0 %v1041
    %1097 = vmatpush.msra.mxu0 %v1040
    %1098 = vmatpush.msra.mxu0 %v1039
    %1099 = vmatpush.msra.mxu0 %v1038
    %1100 = vmatmul.f32.gmra.mxu0 %v699
    %v1101 = vpop.f32.mrf.mxu0
    %v1102 = vadd.f32 %v1083, %v1101
    %1103 = vdwg.mxu0
    %v1104 = vadd.f32 %v1082, %v1102
    %v1105 = vxor.u32 %v1104, 2147483648
    %v1106 = vmul.f32 %v1105, 1.442695
    %v1107 = vpow.pop %v1106
    %v1108 = vadd.f32 %v1107, 1.0
    %v1109 = vrcp.pop %v1108
    %v1110 = vmul.f32 %v1108, %v1109
    %v1111 = vsub.f32 1.0, %v1110
    %v1112 = vmul.f32 %v1109, %v1111
    %v1113 = vadd.f32 %v1109, %v1112
    %vm1114 = vweird.f32 %v1108
    %vm1115 = vweird.f32 %v1109
    %vm1116 = vmor %vm1114, %vm1115
    %v1117 = vsel %vm1116, %v1109, %v1113
    %v1118 = vand.u32 2147483647, %v1108
    %vm1119 = vcmp.eq.f32.partialorder %v1118, 8.507059e+37
    %v1120 = vand.u32 %v1108, 2147483648
    %v1121 = vor.u32 1.1754944e-38, %v1120
    %v1122 = vsel %vm1119, %v1121, %v1117
    %v1123 = vmul.f32 1.0, %v1122
    %1125 = vrot.lane.b32.xlu0 %v1102, 64
    %v1126 = vpop.permute.xlu0 %1125
    %v1128 = vmul.f32 %v1123, %v1126
    %1130 = vrot.lane.b32.xlu0 %v1128, 64
    %v1131 = vpop.permute.xlu0 %1130
    %v1133 = vadd.f32 %v1082, %v1131
    %v1134 = vtanh.pop %v1133
    %v1135 = vsub.f32 1.0, %v1123
    %1137 = vrot.lane.b32.xlu0 %v1134, 96
    %v1138 = vpop.permute.xlu0 %1137
    %v1140 = vmul.f32 %v1135, %v1138
    %v1141 = vmul.f32 %v1123, 0.0
    %v1142 = vadd.f32 %v1140, %v1141
    %1144 = vrot.lane.b32.xlu0 %v1142, 96
    %v1145 = vpop.permute.xlu0 %1144
    %1147 = vst.msk [vmem:[#allocation5] sm:$0x3] %vm764, %v1145
    %v1148 = vld [vmem:[#allocation4 + $0x2] sm:$0x3]
    %v1149 = vsel %vm697, %v1145, 0
    %1151 = vmatpush.msra.mxu0 0.0
    %1152 = vmatpush.msra.mxu0 0.0
    %1153 = vmatpush.msra.mxu0 0.0
    %1154 = vmatpush.msra.mxu0 0.0
    %1155 = vmatpush.msra.mxu0 0.0
    %1156 = vmatpush.msra.mxu0 0.0
    %1157 = vmatpush.msra.mxu0 0.0
    %1158 = vmatpush.msra.mxu0 0.0
    %1159 = vmatpush.msra.mxu0 0.0
    %1160 = vmatpush.msra.mxu0 0.0
    %1161 = vmatpush.msra.mxu0 0.0
    %1162 = vmatpush.msra.mxu0 0.0
    %1163 = vmatpush.msra.mxu0 %v1041
    %1164 = vmatpush.msra.mxu0 %v1040
    %1165 = vmatpush.msra.mxu0 %v1039
    %1166 = vmatpush.msra.mxu0 %v1038
    %1167 = vmatmul.f32.gmra.mxu0 %v1149
    %v1168 = vpop.f32.mrf.mxu0
    %v1169 = vadd.f32 %v1083, %v1168
    %1170 = vdwg.mxu0
    %v1171 = vadd.f32 %v1148, %v1169
    %v1172 = vxor.u32 %v1171, 2147483648
    %v1173 = vmul.f32 %v1172, 1.442695
    %v1174 = vpow.pop %v1173
    %v1175 = vadd.f32 %v1174, 1.0
    %v1176 = vrcp.pop %v1175
    %v1177 = vmul.f32 %v1175, %v1176
    %v1178 = vsub.f32 1.0, %v1177
    %v1179 = vmul.f32 %v1176, %v1178
    %v1180 = vadd.f32 %v1176, %v1179
    %vm1181 = vweird.f32 %v1175
    %vm1182 = vweird.f32 %v1176
    %vm1183 = vmor %vm1181, %vm1182
    %v1184 = vsel %vm1183, %v1176, %v1180
    %v1185 = vand.u32 2147483647, %v1175
    %vm1186 = vcmp.eq.f32.partialorder %v1185, 8.507059e+37
    %v1187 = vand.u32 %v1175, 2147483648
    %v1188 = vor.u32 1.1754944e-38, %v1187
    %v1189 = vsel %vm1186, %v1188, %v1184
    %v1190 = vmul.f32 1.0, %v1189
    %1192 = vrot.lane.b32.xlu0 %v1169, 64
    %v1193 = vpop.permute.xlu0 %1192
    %v1195 = vmul.f32 %v1190, %v1193
    %1197 = vrot.lane.b32.xlu0 %v1195, 64
    %v1198 = vpop.permute.xlu0 %1197
    %v1200 = vadd.f32 %v1148, %v1198
    %v1201 = vtanh.pop %v1200
    %v1202 = vsub.f32 1.0, %v1190
    %1204 = vrot.lane.b32.xlu0 %v1201, 96
    %v1205 = vpop.permute.xlu0 %1204
    %v1207 = vmul.f32 %v1202, %v1205
    %v1208 = vmul.f32 %v1190, %v1142
    %v1209 = vadd.f32 %v1207, %v1208
    %1211 = vrot.lane.b32.xlu0 %v1209, 96
    %v1212 = vpop.permute.xlu0 %1211
    %1214 = vst.msk [vmem:[#allocation5 + $0x2] sm:$0x3] %vm764, %v1212
    %v1215 = vld [vmem:[#allocation4 + $0x4] sm:$0x3]
    %v1216 = vsel %vm697, %v1212, 0
    %1218 = vmatpush.msra.mxu0 0.0
    %1219 = vmatpush.msra.mxu0 0.0
    %1220 = vmatpush.msra.mxu0 0.0
    %1221 = vmatpush.msra.mxu0 0.0
    %1222 = vmatpush.msra.mxu0 0.0
    %1223 = vmatpush.msra.mxu0 0.0
    %1224 = vmatpush.msra.mxu0 0.0
    %1225 = vmatpush.msra.mxu0 0.0
    %1226 = vmatpush.msra.mxu0 0.0
    %1227 = vmatpush.msra.mxu0 0.0
    %1228 = vmatpush.msra.mxu0 0.0
    %1229 = vmatpush.msra.mxu0 0.0
    %1230 = vmatpush.msra.mxu0 %v1041
    %1231 = vmatpush.msra.mxu0 %v1040
    %1232 = vmatpush.msra.mxu0 %v1039
    %1233 = vmatpush.msra.mxu0 %v1038
    %1234 = vmatmul.f32.gmra.mxu0 %v1216
    %v1235 = vpop.f32.mrf.mxu0
    %v1236 = vadd.f32 %v1083, %v1235
    %1237 = vdwg.mxu0
    %v1238 = vadd.f32 %v1215, %v1236
    %v1239 = vxor.u32 %v1238, 2147483648
    %v1240 = vmul.f32 %v1239, 1.442695
    %v1241 = vpow.pop %v1240
    %v1242 = vadd.f32 %v1241, 1.0
    %v1243 = vrcp.pop %v1242
    %v1244 = vmul.f32 %v1242, %v1243
    %v1245 = vsub.f32 1.0, %v1244
    %v1246 = vmul.f32 %v1243, %v1245
    %v1247 = vadd.f32 %v1243, %v1246
    %vm1248 = vweird.f32 %v1242
    %vm1249 = vweird.f32 %v1243
    %vm1250 = vmor %vm1248, %vm1249
    %v1251 = vsel %vm1250, %v1243, %v1247
    %v1252 = vand.u32 2147483647, %v1242
    %vm1253 = vcmp.eq.f32.partialorder %v1252, 8.507059e+37
    %v1254 = vand.u32 %v1242, 2147483648
    %v1255 = vor.u32 1.1754944e-38, %v1254
    %v1256 = vsel %vm1253, %v1255, %v1251
    %v1257 = vmul.f32 1.0, %v1256
    %1259 = vrot.lane.b32.xlu0 %v1236, 64
    %v1260 = vpop.permute.xlu0 %1259
    %v1262 = vmul.f32 %v1257, %v1260
    %1264 = vrot.lane.b32.xlu0 %v1262, 64
    %v1265 = vpop.permute.xlu0 %1264
    %v1267 = vadd.f32 %v1215, %v1265
    %v1268 = vtanh.pop %v1267
    %v1269 = vsub.f32 1.0, %v1257
    %1271 = vrot.lane.b32.xlu0 %v1268, 96
    %v1272 = vpop.permute.xlu0 %1271
    %v1274 = vmul.f32 %v1269, %v1272
    %v1275 = vmul.f32 %v1257, %v1209
    %v1276 = vadd.f32 %v1274, %v1275
    %1278 = vrot.lane.b32.xlu0 %v1276, 96
    %v1279 = vpop.permute.xlu0 %1278
    %1281 = vst.msk [vmem:[#allocation5 + $0x4] sm:$0x3] %vm764, %v1279
    %v1282 = vld [vmem:[#allocation4 + $0x6] sm:$0x3]
    %v1283 = vsel %vm697, %v1279, 0
    %1285 = vmatpush.msra.mxu0 0.0
    %1286 = vmatpush.msra.mxu0 0.0
    %1287 = vmatpush.msra.mxu0 0.0
    %1288 = vmatpush.msra.mxu0 0.0
    %1289 = vmatpush.msra.mxu0 0.0
    %1290 = vmatpush.msra.mxu0 0.0
    %1291 = vmatpush.msra.mxu0 0.0
    %1292 = vmatpush.msra.mxu0 0.0
    %1293 = vmatpush.msra.mxu0 0.0
    %1294 = vmatpush.msra.mxu0 0.0
    %1295 = vmatpush.msra.mxu0 0.0
    %1296 = vmatpush.msra.mxu0 0.0
    %1297 = vmatpush.msra.mxu0 %v1041
    %1298 = vmatpush.msra.mxu0 %v1040
    %1299 = vmatpush.msra.mxu0 %v1039
    %1300 = vmatpush.msra.mxu0 %v1038
    %1301 = vmatmul.f32.gmra.mxu0 %v1283
    %v1302 = vpop.f32.mrf.mxu0
    %v1303 = vadd.f32 %v1083, %v1302
    %1304 = vdwg.mxu0
    %v1305 = vadd.f32 %v1282, %v1303
    %v1306 = vxor.u32 %v1305, 2147483648
    %v1307 = vmul.f32 %v1306, 1.442695
    %v1308 = vpow.pop %v1307
    %v1309 = vadd.f32 %v1308, 1.0
    %v1310 = vrcp.pop %v1309
    %v1311 = vmul.f32 %v1309, %v1310
    %v1312 = vsub.f32 1.0, %v1311
    %v1313 = vmul.f32 %v1310, %v1312
    %v1314 = vadd.f32 %v1310, %v1313
    %vm1315 = vweird.f32 %v1309
    %vm1316 = vweird.f32 %v1310
    %vm1317 = vmor %vm1315, %vm1316
    %v1318 = vsel %vm1317, %v1310, %v1314
    %v1319 = vand.u32 2147483647, %v1309
    %vm1320 = vcmp.eq.f32.partialorder %v1319, 8.507059e+37
    %v1321 = vand.u32 %v1309, 2147483648
    %v1322 = vor.u32 1.1754944e-38, %v1321
    %v1323 = vsel %vm1320, %v1322, %v1318
    %v1324 = vmul.f32 1.0, %v1323
    %1326 = vrot.lane.b32.xlu0 %v1303, 64
    %v1327 = vpop.permute.xlu0 %1326
    %v1329 = vmul.f32 %v1324, %v1327
    %1331 = vrot.lane.b32.xlu0 %v1329, 64
    %v1332 = vpop.permute.xlu0 %1331
    %v1334 = vadd.f32 %v1282, %v1332
    %v1335 = vtanh.pop %v1334
    %v1336 = vsub.f32 1.0, %v1324
    %1338 = vrot.lane.b32.xlu0 %v1335, 96
    %v1339 = vpop.permute.xlu0 %1338
    %v1341 = vmul.f32 %v1336, %v1339
    %v1342 = vmul.f32 %v1324, %v1276
    %v1343 = vadd.f32 %v1341, %v1342
    %1345 = vrot.lane.b32.xlu0 %v1343, 96
    %v1346 = vpop.permute.xlu0 %1345
    %1348 = vst.msk [vmem:[#allocation5 + $0x6] sm:$0x3] %vm764, %v1346
    %v1349 = vld [vmem:[#allocation4 + $0x8] sm:$0x3]
    %v1350 = vsel %vm697, %v1346, 0
    %1352 = vmatpush.msra.mxu0 0.0
    %1353 = vmatpush.msra.mxu0 0.0
    %1354 = vmatpush.msra.mxu0 0.0
    %1355 = vmatpush.msra.mxu0 0.0
    %1356 = vmatpush.msra.mxu0 0.0
    %1357 = vmatpush.msra.mxu0 0.0
    %1358 = vmatpush.msra.mxu0 0.0
    %1359 = vmatpush.msra.mxu0 0.0
    %1360 = vmatpush.msra.mxu0 0.0
    %1361 = vmatpush.msra.mxu0 0.0
    %1362 = vmatpush.msra.mxu0 0.0
    %1363 = vmatpush.msra.mxu0 0.0
    %1364 = vmatpush.msra.mxu0 %v1041
    %1365 = vmatpush.msra.mxu0 %v1040
    %1366 = vmatpush.msra.mxu0 %v1039
    %1367 = vmatpush.msra.mxu0 %v1038
    %1368 = vmatmul.f32.gmra.mxu0 %v1350
    %v1369 = vpop.f32.mrf.mxu0
    %v1370 = vadd.f32 %v1083, %v1369
    %1371 = vdwg.mxu0
    %v1372 = vadd.f32 %v1349, %v1370
    %v1373 = vxor.u32 %v1372, 2147483648
    %v1374 = vmul.f32 %v1373, 1.442695
    %v1375 = vpow.pop %v1374
    %v1376 = vadd.f32 %v1375, 1.0
    %v1377 = vrcp.pop %v1376
    %v1378 = vmul.f32 %v1376, %v1377
    %v1379 = vsub.f32 1.0, %v1378
    %v1380 = vmul.f32 %v1377, %v1379
    %v1381 = vadd.f32 %v1377, %v1380
    %vm1382 = vweird.f32 %v1376
    %vm1383 = vweird.f32 %v1377
    %vm1384 = vmor %vm1382, %vm1383
    %v1385 = vsel %vm1384, %v1377, %v1381
    %v1386 = vand.u32 2147483647, %v1376
    %vm1387 = vcmp.eq.f32.partialorder %v1386, 8.507059e+37
    %v1388 = vand.u32 %v1376, 2147483648
    %v1389 = vor.u32 1.1754944e-38, %v1388
    %v1390 = vsel %vm1387, %v1389, %v1385
    %v1391 = vmul.f32 1.0, %v1390
    %1393 = vrot.lane.b32.xlu0 %v1370, 64
    %v1394 = vpop.permute.xlu0 %1393
    %v1396 = vmul.f32 %v1391, %v1394
    %1398 = vrot.lane.b32.xlu0 %v1396, 64
    %v1399 = vpop.permute.xlu0 %1398
    %v1401 = vadd.f32 %v1349, %v1399
    %v1402 = vtanh.pop %v1401
    %v1403 = vsub.f32 1.0, %v1391
    %1405 = vrot.lane.b32.xlu0 %v1402, 96
    %v1406 = vpop.permute.xlu0 %1405
    %v1408 = vmul.f32 %v1403, %v1406
    %v1409 = vmul.f32 %v1391, %v1343
    %v1410 = vadd.f32 %v1408, %v1409
    %1412 = vrot.lane.b32.xlu0 %v1410, 96
    %v1413 = vpop.permute.xlu0 %1412
    %1415 = vst.msk [vmem:[#allocation5 + $0x8] sm:$0x3] %vm764, %v1413
    %v1416 = vld [vmem:[#allocation6 + $0x160] sm:$0xff]
    %v1417 = vld [vmem:[#allocation6 + $0x168] sm:$0xff]
    %v1418 = vld [vmem:[#allocation6 + $0x170] sm:$0xff]
    %v1419 = vld [vmem:[#allocation6 + $0x178] sm:$0xff]
    %v1420 = vld [vmem:[#allocation6 + $0x180] sm:$0x1]
    %v1421 = vld [vmem:[#allocation5] sm:$0xff]
    %v1422 = vld [vmem:[#allocation5 + $0x8] sm:$0x3]
    %v1423 = vperm.slane %v1420, 0
    %v1425 = vsel %vm697, %v1421, 0
    %v1428 = vsel %vm697, %v1422, 0
    %1430 = vmatpush.msra.mxu0 0.0
    %1431 = vmatpush.msra.mxu0 0.0
    %1432 = vmatpush.msra.mxu0 0.0
    %1433 = vmatpush.msra.mxu0 0.0
    %1434 = vmatpush.msra.mxu0 0.0
    %1435 = vmatpush.msra.mxu0 0.0
    %1436 = vmatpush.msra.mxu0 0.0
    %1437 = vmatpush.msra.mxu0 0.0
    %1438 = vmatpush.msra.mxu0 0.0
    %1439 = vmatpush.msra.mxu0 0.0
    %1440 = vmatpush.msra.mxu0 0.0
    %1441 = vmatpush.msra.mxu0 0.0
    %1442 = vmatpush.msra.mxu0 %v1419
    %1443 = vmatpush.msra.mxu0 %v1418
    %1444 = vmatpush.msra.mxu0 %v1417
    %1445 = vmatpush.msra.mxu0 %v1416
    %1446 = vmatmul.f32.gmra.mxu0 %v1425
    %v1447 = vpop.f32.mrf.mxu0
    %v1448 = vadd.f32 %v1423, %v1447
    %1449 = vmatmul.f32.gmra.mxu0 %v1428
    %v1450 = vpop.f32.mrf.mxu0
    %v1451 = vadd.f32 %v1423, %v1450
    %1452 = vdwg.mxu0
    %1453 = vst [vmem:[%s5] sm:$0xff] %v1448
    %1454 = vst [vmem:[%s5 + $0x8] sm:$0x3] %v1451
    // Predicated region
    $region26: #{bit_decoder_forward.1} parent=1 // pred_check
      _
    $region27: #{bit_decoder_forward.1} parent=1 // pred_check_branch
      %1456 = sbr.rel (0) target = $region29
    $region28: #{bit_decoder_forward.1} parent=1 // pred_region
      _
    $region29: #{bit_decoder_forward.1} parent=1 // pred_fallthru
      _
    // Predicated region
    $region30: #{bit_decoder_forward.1} parent=1 // pred_check
      _
    $region31: #{bit_decoder_forward.1} parent=1 // pred_check_branch
      %1458 = sbr.rel (0) target = $region33
    $region32: #{bit_decoder_forward.1} parent=1 // pred_region
      _
    $region33: #{bit_decoder_forward.1} parent=1 // pred_fallthru
      _
    %1459 = vsyncpa [#allocation7], 1

</llo_original>
